<compile_context>
chip_gen: v5e
topology: v5e:2x2
jax: 0.10.0
libtpu: 0.0.40
codegen_flags: <defaults>
</compile_context>

<pallas_src>
import jax
import jax.numpy as jnp
import numpy as np
from jax.experimental import pallas as pl
from jax.experimental.pallas import tpu as pltpu

_VMEM = pltpu.MemorySpace.VMEM
_EPS = 1e-5


# ----------------------------------------------------------------------------
# small exact helpers used inside the kernel (no MXU, no reshapes)
# ----------------------------------------------------------------------------
def _tile_lanes(v, reps):
    """(1, C) -> (1, reps*C) by exact lane concatenation."""
    return jnp.concatenate([v] * reps, axis=1)


def _fold_lanes(v, groups, c):
    """(1, groups*c) -> (1, c): exact sum over the `groups` lane blocks."""
    out = v[:, 0:c]
    for g in range(1, groups):
        out = out + v[:, g * c:(g + 1) * c]
    return out


def _bn_relu(pre_list, gamma, beta, wo, c, count):
    """Training-mode BatchNorm (+affine) + ReLU on width-folded activations.

    pre_list: per-image (rows, wo*c) pre-activations (kept in vregs/VMEM).
    gamma/beta: (1, c).  Statistics are taken over all (n, row, wo) positions.
    """
    inv_count = 1.0 / count
    rowsum = jnp.sum(pre_list[0], axis=0, keepdims=True)
    for p in pre_list[1:]:
        rowsum = rowsum + jnp.sum(p, axis=0, keepdims=True)
    mean_c = _fold_lanes(rowsum, wo, c) * inv_count          # (1, c)
    mean_l = _tile_lanes(mean_c, wo)                         # (1, wo*c)

    cent = [p - mean_l for p in pre_list]
    sqsum = jnp.sum(cent[0] * cent[0], axis=0, keepdims=True)
    for ce in cent[1:]:
        sqsum = sqsum + jnp.sum(ce * ce, axis=0, keepdims=True)
    var_c = _fold_lanes(sqsum, wo, c) * inv_count            # biased variance

    scale_l = _tile_lanes(gamma * jax.lax.rsqrt(var_c + _EPS), wo)
    beta_l = _tile_lanes(beta, wo)
    return [jnp.maximum(ce * scale_l + beta_l, 0.0) for ce in cent]


# ----------------------------------------------------------------------------
# fused kernel: conv1+BN+ReLU -> conv2+BN+ReLU -> 2x2 maxpool, all in VMEM
# ----------------------------------------------------------------------------
def _make_kernel(batch, height, cmid, cout):
    ho1 = height - 2
    ho2 = height - 4
    hp = ho2 // 2

    def kernel(x_ref, band1_ref, b1_ref, g1_ref, be1_ref,
               band2_ref, b2_ref, g2_ref, be2_ref,
               skip_ref, pool_ref):
        wo1 = band1_ref.shape[2] // cmid
        wo2 = band2_ref.shape[2] // cout
        wp = wo2 // 2

        # ---- conv1: 3 row-shifted banded matmuls per image + bias ----------
        b1_l = _tile_lanes(b1_ref[...], wo1)
        pre1 = []
        for n in range(batch):
            xn = x_ref[n]                                    # (H, W*Cin)
            acc = jnp.dot(xn[0:ho1, :], band1_ref[0],
                          preferred_element_type=jnp.float32)
            acc = acc + jnp.dot(xn[1:1 + ho1, :], band1_ref[1],
                                preferred_element_type=jnp.float32)
            acc = acc + jnp.dot(xn[2:2 + ho1, :], band1_ref[2],
                                preferred_element_type=jnp.float32)
            pre1.append(acc + b1_l)                          # (Ho1, Wo1*Cmid)

        # ---- BN1 (batch stats) + ReLU --------------------------------------
        act1 = _bn_relu(pre1, g1_ref[...], be1_ref[...], wo1, cmid,
                        batch * ho1 * wo1)

        # ---- conv2 ----------------------------------------------------------
        b2_l = _tile_lanes(b2_ref[...], wo2)
        pre2 = []
        for n in range(batch):
            a = act1[n]                                      # (Ho1, Wo1*Cmid)
            acc = jnp.dot(a[0:ho2, :], band2_ref[0],
                          preferred_element_type=jnp.float32)
            acc = acc + jnp.dot(a[1:1 + ho2, :], band2_ref[1],
                                preferred_element_type=jnp.float32)
            acc = acc + jnp.dot(a[2:2 + ho2, :], band2_ref[2],
                                preferred_element_type=jnp.float32)
            pre2.append(acc + b2_l)                          # (Ho2, Wo2*Cout)

        # ---- BN2 + ReLU -> skip ---------------------------------------------
        skip = _bn_relu(pre2, g2_ref[...], be2_ref[...], wo2, cout,
                        batch * ho2 * wo2)

        # ---- store skip + fused exact 2x2 max pool --------------------------
        for n in range(batch):
            s = skip[n]                                      # (Ho2, Wo2*Cout)
            skip_ref[n] = s
            # width pairs (lane blocks of size Cout)
            cols = []
            for w in range(wp):
                e = s[:, (2 * w) * cout:(2 * w + 1) * cout]
                o = s[:, (2 * w + 1) * cout:(2 * w + 2) * cout]
                cols.append(jnp.maximum(e, o))
            colmax = jnp.concatenate(cols, axis=1)           # (Ho2, Wp*Cout)
            # height pairs (adjacent rows)
            rows = []
            for h in range(hp):
                rows.append(jnp.maximum(colmax[2 * h:2 * h + 1, :],
                                        colmax[2 * h + 1:2 * h + 2, :]))
            pool_ref[n] = jnp.concatenate(rows, axis=0)      # (Hp, Wp*Cout)

    return kernel


# ----------------------------------------------------------------------------
# host-side weight preparation (exact, tiny, no dot ops)
# ----------------------------------------------------------------------------
def _banded_weight(w_oihw, w_in):
    """(Cout, Cin, 3, 3) -> (3, w_in*Cin, (w_in-2)*Cout) banded matmul weights.

    band[dy, i*Cin+ci, wo*Cout+co] = w[co, ci, dy, i-wo] for 0 <= i-wo < 3,
    so a valid 3x3 conv on a width-folded (H, W*Cin) image is
        out[ho] = sum_dy  img[ho+dy, :] @ band[dy].
    Built with 0/1 masking only, keeping weight values bit-identical.
    """
    cout, cin = w_oihw.shape[0], w_oihw.shape[1]
    wo = w_in - 2
    w = jnp.transpose(w_oihw, (2, 3, 1, 0))                  # (3, 3, Cin, Cout)
    i_idx = jnp.arange(w_in)[:, None]
    o_idx = jnp.arange(wo)[None, :]
    band = jnp.zeros((3, w_in, cin, wo, cout), jnp.float32)
    for dx in range(3):
        mask = (i_idx == o_idx + dx).astype(jnp.float32)     # (w_in, wo)
        band = band + (mask[None, :, None, :, None] *
                       w[:, dx][:, None, :, None, :])
    return band.reshape(3, w_in * cin, wo * cout)


@jax.jit
def encoder_block_forward(x_nchw, params):
    """EncoderBlock.forward: returns (skip, pooled), both NCHW like PyTorch."""
    x = jnp.transpose(x_nchw, (0, 2, 3, 1)).astype(jnp.float32)   # NHWC
    n, h, w, cin = x.shape
    cmid = params["w1"].shape[0]
    cout = params["w2"].shape[0]
    ho1, wo1 = h - 2, w - 2
    ho2, wo2 = h - 4, w - 4
    hp, wp = ho2 // 2, wo2 // 2
    # TODO(synk): odd pooled dims (MaxPool floor) not handled here.
    assert ho2 % 2 == 0 and wo2 % 2 == 0

    x3 = x.reshape(n, h, w * cin)                                  # width-folded
    band1 = _banded_weight(params["w1"].astype(jnp.float32), w)
    band2 = _banded_weight(params["w2"].astype(jnp.float32), wo1)

    def row(v, c):
        return v.reshape(1, c).astype(jnp.float32)

    kernel = _make_kernel(n, h, cmid, cout)
    skip3, pool3 = pl.pallas_call(
        kernel,
        out_shape=(jax.ShapeDtypeStruct((n, ho2, wo2 * cout), jnp.float32),
                   jax.ShapeDtypeStruct((n, hp, wp * cout), jnp.float32)),
        in_specs=[pl.BlockSpec(memory_space=_VMEM)] * 9,
        out_specs=(pl.BlockSpec(memory_space=_VMEM),
                   pl.BlockSpec(memory_space=_VMEM)),
    )(x3, band1,
      row(params["b1"], cmid), row(params["g1"], cmid), row(params["be1"], cmid),
      band2,
      row(params["b2"], cout), row(params["g2"], cout), row(params["be2"], cout))

    skip = jnp.transpose(skip3.reshape(n, ho2, wo2, cout), (0, 3, 1, 2))
    pooled = jnp.transpose(pool3.reshape(n, hp, wp, cout), (0, 3, 1, 2))
    return skip, pooled


# ----------------------------------------------------------------------------
# Pure-JAX reference (for correctness check only)
# ----------------------------------------------------------------------------
def _reference_forward(x_nchw, params):
    def conv(x, w, b):
        y = jax.lax.conv_general_dilated(
            x, w, (1, 1), "VALID", dimension_numbers=("NCHW", "OIHW", "NCHW"))
        return y + b[None, :, None, None]

    def bn(x, g, be):
        mean = jnp.mean(x, axis=(0, 2, 3), keepdims=True)
        var = jnp.mean((x - mean) ** 2, axis=(0, 2, 3), keepdims=True)
        return (x - mean) * jax.lax.rsqrt(var + _EPS) * g[None, :, None, None] \
            + be[None, :, None, None]

    h = jax.nn.relu(bn(conv(x_nchw, params["w1"], params["b1"]),
                       params["g1"], params["be1"]))
    skip = jax.nn.relu(bn(conv(h, params["w2"], params["b2"]),
                          params["g2"], params["be2"]))
    pooled = jax.lax.reduce_window(
        skip, -jnp.inf, jax.lax.max, (1, 1, 2, 2), (1, 1, 2, 2), "VALID")
    return skip, pooled


# ----------------------------------------------------------------------------
# Main
# ----------------------------------------------------------------------------
if __name__ == "__main__":
    N, C_IN, C_OUT, H, W = 2, 4, 8, 16, 16   # mid_channels = out_channels = 8

    key = jax.random.PRNGKey(0)
    k1, k2, k3, k4, kx = jax.random.split(key, 5)
    params = {
        # ConvBlock.conv1 / conv2 weights & biases (deterministic synthetic)
        "w1": jax.random.normal(k1, (C_OUT, C_IN, 3, 3), jnp.float32) * 0.1,
        "b1": jax.random.normal(k2, (C_OUT,), jnp.float32) * 0.05,
        "w2": jax.random.normal(k3, (C_OUT, C_OUT, 3, 3), jnp.float32) * 0.1,
        "b2": jax.random.normal(k4, (C_OUT,), jnp.float32) * 0.05,
        # BatchNorm affine params (PyTorch default init: gamma=1, beta=0)
        "g1": jnp.ones((C_OUT,), jnp.float32),
        "be1": jnp.zeros((C_OUT,), jnp.float32),
        "g2": jnp.ones((C_OUT,), jnp.float32),
        "be2": jnp.zeros((C_OUT,), jnp.float32),
    }

    x = jax.random.normal(kx, (N, C_IN, H, W), jnp.float32)

    skip, pooled = encoder_block_forward(x, params)
    skip = jax.block_until_ready(skip)
    pooled = jax.block_until_ready(pooled)

    assert skip.shape == (N, C_OUT, H - 4, W - 4)
    assert pooled.shape == (N, C_OUT, (H - 4) // 2, (W - 4) // 2)

    ref_skip, ref_pooled = _reference_forward(x, params)
    np.testing.assert_allclose(np.asarray(skip), np.asarray(ref_skip),
                               rtol=2e-4, atol=2e-4)
    np.testing.assert_allclose(np.asarray(pooled), np.asarray(ref_pooled),
                               rtol=2e-4, atol=2e-4)

    print("KERNEL_OK")
</pallas_src>

<mosaic_0001>
module attributes {stable_mosaic.version = 11 : i64} {
  func.func @kernel(%arg0: memref<2x16x64xf32, #tpu.memory_space<vmem>>, %arg1: memref<3x64x112xf32, #tpu.memory_space<vmem>>, %arg2: memref<1x8xf32, #tpu.memory_space<vmem>>, %arg3: memref<1x8xf32, #tpu.memory_space<vmem>>, %arg4: memref<1x8xf32, #tpu.memory_space<vmem>>, %arg5: memref<3x112x96xf32, #tpu.memory_space<vmem>>, %arg6: memref<1x8xf32, #tpu.memory_space<vmem>>, %arg7: memref<1x8xf32, #tpu.memory_space<vmem>>, %arg8: memref<1x8xf32, #tpu.memory_space<vmem>>, %arg9: memref<2x12x96xf32, #tpu.memory_space<vmem>>, %arg10: memref<2x6x48xf32, #tpu.memory_space<vmem>>) attributes {dimension_semantics = [], scalar_prefetch = 0 : i64, scratch_operands = 0 : i64, tpu.core_type = #tpu.core_type<tc>} {
    %c0 = arith.constant 0 : index
    %c0_0 = arith.constant 0 : index
    %0 = vector.load %arg2[%c0, %c0_0] : memref<1x8xf32, #tpu.memory_space<vmem>>, vector<1x8xf32>
    %1 = tpu.concatenate %0, %0, %0, %0, %0, %0, %0, %0, %0, %0, %0, %0, %0, %0 in 1 : vector<1x8xf32>, vector<1x8xf32>, vector<1x8xf32>, vector<1x8xf32>, vector<1x8xf32>, vector<1x8xf32>, vector<1x8xf32>, vector<1x8xf32>, vector<1x8xf32>, vector<1x8xf32>, vector<1x8xf32>, vector<1x8xf32>, vector<1x8xf32>, vector<1x8xf32> -> vector<1x112xf32>
    %c0_1 = arith.constant 0 : index
    %c0_2 = arith.constant 0 : index
    %c0_3 = arith.constant 0 : index
    %2 = vector.load %arg0[%c0_1, %c0_2, %c0_3] : memref<2x16x64xf32, #tpu.memory_space<vmem>>, vector<1x16x64xf32>
    %3 = vector.shape_cast %2 : vector<1x16x64xf32> to vector<16x64xf32>
    %4 = vector.extract_strided_slice %3 {offsets = [0, 0], sizes = [14, 64], strides = [1, 1]} : vector<16x64xf32> to vector<14x64xf32>
    %c0_4 = arith.constant 0 : index
    %c0_5 = arith.constant 0 : index
    %c0_6 = arith.constant 0 : index
    %5 = vector.load %arg1[%c0_4, %c0_5, %c0_6] : memref<3x64x112xf32, #tpu.memory_space<vmem>>, vector<1x64x112xf32>
    %6 = vector.shape_cast %5 : vector<1x64x112xf32> to vector<64x112xf32>
    %cst = arith.constant dense<0.000000e+00> : vector<14x112xf32>
    %7 = tpu.matmul %4, %6, %cst {dimension_numbers = #tpu.dot_dimension_numbers<[1], [0], [0], [1], [0, 0, 1, 1], [], []>} : vector<14x64xf32>, vector<64x112xf32>, vector<14x112xf32> -> vector<14x112xf32>
    %8 = vector.extract_strided_slice %3 {offsets = [1, 0], sizes = [14, 64], strides = [1, 1]} : vector<16x64xf32> to vector<14x64xf32>
    %c1 = arith.constant 1 : index
    %c0_7 = arith.constant 0 : index
    %c0_8 = arith.constant 0 : index
    %9 = vector.load %arg1[%c1, %c0_7, %c0_8] : memref<3x64x112xf32, #tpu.memory_space<vmem>>, vector<1x64x112xf32>
    %10 = vector.shape_cast %9 : vector<1x64x112xf32> to vector<64x112xf32>
    %cst_9 = arith.constant dense<0.000000e+00> : vector<14x112xf32>
    %11 = tpu.matmul %8, %10, %cst_9 {dimension_numbers = #tpu.dot_dimension_numbers<[1], [0], [0], [1], [0, 0, 1, 1], [], []>} : vector<14x64xf32>, vector<64x112xf32>, vector<14x112xf32> -> vector<14x112xf32>
    %12 = arith.addf %7, %11 : vector<14x112xf32>
    %13 = vector.extract_strided_slice %3 {offsets = [2, 0], sizes = [14, 64], strides = [1, 1]} : vector<16x64xf32> to vector<14x64xf32>
    %c2 = arith.constant 2 : index
    %c0_10 = arith.constant 0 : index
    %c0_11 = arith.constant 0 : index
    %14 = vector.load %arg1[%c2, %c0_10, %c0_11] : memref<3x64x112xf32, #tpu.memory_space<vmem>>, vector<1x64x112xf32>
    %15 = vector.shape_cast %14 : vector<1x64x112xf32> to vector<64x112xf32>
    %cst_12 = arith.constant dense<0.000000e+00> : vector<14x112xf32>
    %16 = tpu.matmul %13, %15, %cst_12 {dimension_numbers = #tpu.dot_dimension_numbers<[1], [0], [0], [1], [0, 0, 1, 1], [], []>} : vector<14x64xf32>, vector<64x112xf32>, vector<14x112xf32> -> vector<14x112xf32>
    %17 = arith.addf %12, %16 : vector<14x112xf32>
    %18 = vector.broadcast %1 : vector<1x112xf32> to vector<14x112xf32>
    %19 = arith.addf %17, %18 : vector<14x112xf32>
    %c1_13 = arith.constant 1 : index
    %c0_14 = arith.constant 0 : index
    %c0_15 = arith.constant 0 : index
    %20 = vector.load %arg0[%c1_13, %c0_14, %c0_15] : memref<2x16x64xf32, #tpu.memory_space<vmem>>, vector<1x16x64xf32>
    %21 = vector.shape_cast %20 : vector<1x16x64xf32> to vector<16x64xf32>
    %22 = vector.extract_strided_slice %21 {offsets = [0, 0], sizes = [14, 64], strides = [1, 1]} : vector<16x64xf32> to vector<14x64xf32>
    %c0_16 = arith.constant 0 : index
    %c0_17 = arith.constant 0 : index
    %c0_18 = arith.constant 0 : index
    %23 = vector.load %arg1[%c0_16, %c0_17, %c0_18] : memref<3x64x112xf32, #tpu.memory_space<vmem>>, vector<1x64x112xf32>
    %24 = vector.shape_cast %23 : vector<1x64x112xf32> to vector<64x112xf32>
    %cst_19 = arith.constant dense<0.000000e+00> : vector<14x112xf32>
    %25 = tpu.matmul %22, %24, %cst_19 {dimension_numbers = #tpu.dot_dimension_numbers<[1], [0], [0], [1], [0, 0, 1, 1], [], []>} : vector<14x64xf32>, vector<64x112xf32>, vector<14x112xf32> -> vector<14x112xf32>
    %26 = vector.extract_strided_slice %21 {offsets = [1, 0], sizes = [14, 64], strides = [1, 1]} : vector<16x64xf32> to vector<14x64xf32>
    %c1_20 = arith.constant 1 : index
    %c0_21 = arith.constant 0 : index
    %c0_22 = arith.constant 0 : index
    %27 = vector.load %arg1[%c1_20, %c0_21, %c0_22] : memref<3x64x112xf32, #tpu.memory_space<vmem>>, vector<1x64x112xf32>
    %28 = vector.shape_cast %27 : vector<1x64x112xf32> to vector<64x112xf32>
    %cst_23 = arith.constant dense<0.000000e+00> : vector<14x112xf32>
    %29 = tpu.matmul %26, %28, %cst_23 {dimension_numbers = #tpu.dot_dimension_numbers<[1], [0], [0], [1], [0, 0, 1, 1], [], []>} : vector<14x64xf32>, vector<64x112xf32>, vector<14x112xf32> -> vector<14x112xf32>
    %30 = arith.addf %25, %29 : vector<14x112xf32>
    %31 = vector.extract_strided_slice %21 {offsets = [2, 0], sizes = [14, 64], strides = [1, 1]} : vector<16x64xf32> to vector<14x64xf32>
    %c2_24 = arith.constant 2 : index
    %c0_25 = arith.constant 0 : index
    %c0_26 = arith.constant 0 : index
    %32 = vector.load %arg1[%c2_24, %c0_25, %c0_26] : memref<3x64x112xf32, #tpu.memory_space<vmem>>, vector<1x64x112xf32>
    %33 = vector.shape_cast %32 : vector<1x64x112xf32> to vector<64x112xf32>
    %cst_27 = arith.constant dense<0.000000e+00> : vector<14x112xf32>
    %34 = tpu.matmul %31, %33, %cst_27 {dimension_numbers = #tpu.dot_dimension_numbers<[1], [0], [0], [1], [0, 0, 1, 1], [], []>} : vector<14x64xf32>, vector<64x112xf32>, vector<14x112xf32> -> vector<14x112xf32>
    %35 = arith.addf %30, %34 : vector<14x112xf32>
    %36 = vector.broadcast %1 : vector<1x112xf32> to vector<14x112xf32>
    %37 = arith.addf %35, %36 : vector<14x112xf32>
    %c0_28 = arith.constant 0 : index
    %c0_29 = arith.constant 0 : index
    %38 = vector.load %arg3[%c0_28, %c0_29] : memref<1x8xf32, #tpu.memory_space<vmem>>, vector<1x8xf32>
    %c0_30 = arith.constant 0 : index
    %c0_31 = arith.constant 0 : index
    %39 = vector.load %arg4[%c0_30, %c0_31] : memref<1x8xf32, #tpu.memory_space<vmem>>, vector<1x8xf32>
    %cst_32 = arith.constant dense<0.000000e+00> : vector<112xf32>
    %40 = vector.multi_reduction <add>, %19, %cst_32 [0] : vector<14x112xf32> to vector<112xf32>
    %41 = vector.shape_cast %40 : vector<112xf32> to vector<1x112xf32>
    %cst_33 = arith.constant dense<0.000000e+00> : vector<112xf32>
    %42 = vector.multi_reduction <add>, %37, %cst_33 [0] : vector<14x112xf32> to vector<112xf32>
    %43 = vector.shape_cast %42 : vector<112xf32> to vector<1x112xf32>
    %44 = arith.addf %41, %43 : vector<1x112xf32>
    %45 = vector.extract_strided_slice %44 {offsets = [0, 0], sizes = [1, 8], strides = [1, 1]} : vector<1x112xf32> to vector<1x8xf32>
    %46 = vector.extract_strided_slice %44 {offsets = [0, 8], sizes = [1, 8], strides = [1, 1]} : vector<1x112xf32> to vector<1x8xf32>
    %47 = arith.addf %45, %46 : vector<1x8xf32>
    %48 = vector.extract_strided_slice %44 {offsets = [0, 16], sizes = [1, 8], strides = [1, 1]} : vector<1x112xf32> to vector<1x8xf32>
    %49 = arith.addf %47, %48 : vector<1x8xf32>
    %50 = vector.extract_strided_slice %44 {offsets = [0, 24], sizes = [1, 8], strides = [1, 1]} : vector<1x112xf32> to vector<1x8xf32>
    %51 = arith.addf %49, %50 : vector<1x8xf32>
    %52 = vector.extract_strided_slice %44 {offsets = [0, 32], sizes = [1, 8], strides = [1, 1]} : vector<1x112xf32> to vector<1x8xf32>
    %53 = arith.addf %51, %52 : vector<1x8xf32>
    %54 = vector.extract_strided_slice %44 {offsets = [0, 40], sizes = [1, 8], strides = [1, 1]} : vector<1x112xf32> to vector<1x8xf32>
    %55 = arith.addf %53, %54 : vector<1x8xf32>
    %56 = vector.extract_strided_slice %44 {offsets = [0, 48], sizes = [1, 8], strides = [1, 1]} : vector<1x112xf32> to vector<1x8xf32>
    %57 = arith.addf %55, %56 : vector<1x8xf32>
    %58 = vector.extract_strided_slice %44 {offsets = [0, 56], sizes = [1, 8], strides = [1, 1]} : vector<1x112xf32> to vector<1x8xf32>
    %59 = arith.addf %57, %58 : vector<1x8xf32>
    %60 = vector.extract_strided_slice %44 {offsets = [0, 64], sizes = [1, 8], strides = [1, 1]} : vector<1x112xf32> to vector<1x8xf32>
    %61 = arith.addf %59, %60 : vector<1x8xf32>
    %62 = vector.extract_strided_slice %44 {offsets = [0, 72], sizes = [1, 8], strides = [1, 1]} : vector<1x112xf32> to vector<1x8xf32>
    %63 = arith.addf %61, %62 : vector<1x8xf32>
    %64 = vector.extract_strided_slice %44 {offsets = [0, 80], sizes = [1, 8], strides = [1, 1]} : vector<1x112xf32> to vector<1x8xf32>
    %65 = arith.addf %63, %64 : vector<1x8xf32>
    %66 = vector.extract_strided_slice %44 {offsets = [0, 88], sizes = [1, 8], strides = [1, 1]} : vector<1x112xf32> to vector<1x8xf32>
    %67 = arith.addf %65, %66 : vector<1x8xf32>
    %68 = vector.extract_strided_slice %44 {offsets = [0, 96], sizes = [1, 8], strides = [1, 1]} : vector<1x112xf32> to vector<1x8xf32>
    %69 = arith.addf %67, %68 : vector<1x8xf32>
    %70 = vector.extract_strided_slice %44 {offsets = [0, 104], sizes = [1, 8], strides = [1, 1]} : vector<1x112xf32> to vector<1x8xf32>
    %71 = arith.addf %69, %70 : vector<1x8xf32>
    %cst_34 = arith.constant 0.00255102036 : f32
    %72 = vector.broadcast %cst_34 : f32 to vector<1x8xf32>
    %73 = arith.mulf %71, %72 : vector<1x8xf32>
    %74 = tpu.concatenate %73, %73, %73, %73, %73, %73, %73, %73, %73, %73, %73, %73, %73, %73 in 1 : vector<1x8xf32>, vector<1x8xf32>, vector<1x8xf32>, vector<1x8xf32>, vector<1x8xf32>, vector<1x8xf32>, vector<1x8xf32>, vector<1x8xf32>, vector<1x8xf32>, vector<1x8xf32>, vector<1x8xf32>, vector<1x8xf32>, vector<1x8xf32>, vector<1x8xf32> -> vector<1x112xf32>
    %75 = vector.broadcast %74 : vector<1x112xf32> to vector<14x112xf32>
    %76 = arith.subf %19, %75 : vector<14x112xf32>
    %77 = vector.broadcast %74 : vector<1x112xf32> to vector<14x112xf32>
    %78 = arith.subf %37, %77 : vector<14x112xf32>
    %79 = arith.mulf %76, %76 : vector<14x112xf32>
    %cst_35 = arith.constant dense<0.000000e+00> : vector<112xf32>
    %80 = vector.multi_reduction <add>, %79, %cst_35 [0] : vector<14x112xf32> to vector<112xf32>
    %81 = vector.shape_cast %80 : vector<112xf32> to vector<1x112xf32>
    %82 = arith.mulf %78, %78 : vector<14x112xf32>
    %cst_36 = arith.constant dense<0.000000e+00> : vector<112xf32>
    %83 = vector.multi_reduction <add>, %82, %cst_36 [0] : vector<14x112xf32> to vector<112xf32>
    %84 = vector.shape_cast %83 : vector<112xf32> to vector<1x112xf32>
    %85 = arith.addf %81, %84 : vector<1x112xf32>
    %86 = vector.extract_strided_slice %85 {offsets = [0, 0], sizes = [1, 8], strides = [1, 1]} : vector<1x112xf32> to vector<1x8xf32>
    %87 = vector.extract_strided_slice %85 {offsets = [0, 8], sizes = [1, 8], strides = [1, 1]} : vector<1x112xf32> to vector<1x8xf32>
    %88 = arith.addf %86, %87 : vector<1x8xf32>
    %89 = vector.extract_strided_slice %85 {offsets = [0, 16], sizes = [1, 8], strides = [1, 1]} : vector<1x112xf32> to vector<1x8xf32>
    %90 = arith.addf %88, %89 : vector<1x8xf32>
    %91 = vector.extract_strided_slice %85 {offsets = [0, 24], sizes = [1, 8], strides = [1, 1]} : vector<1x112xf32> to vector<1x8xf32>
    %92 = arith.addf %90, %91 : vector<1x8xf32>
    %93 = vector.extract_strided_slice %85 {offsets = [0, 32], sizes = [1, 8], strides = [1, 1]} : vector<1x112xf32> to vector<1x8xf32>
    %94 = arith.addf %92, %93 : vector<1x8xf32>
    %95 = vector.extract_strided_slice %85 {offsets = [0, 40], sizes = [1, 8], strides = [1, 1]} : vector<1x112xf32> to vector<1x8xf32>
    %96 = arith.addf %94, %95 : vector<1x8xf32>
    %97 = vector.extract_strided_slice %85 {offsets = [0, 48], sizes = [1, 8], strides = [1, 1]} : vector<1x112xf32> to vector<1x8xf32>
    %98 = arith.addf %96, %97 : vector<1x8xf32>
    %99 = vector.extract_strided_slice %85 {offsets = [0, 56], sizes = [1, 8], strides = [1, 1]} : vector<1x112xf32> to vector<1x8xf32>
    %100 = arith.addf %98, %99 : vector<1x8xf32>
    %101 = vector.extract_strided_slice %85 {offsets = [0, 64], sizes = [1, 8], strides = [1, 1]} : vector<1x112xf32> to vector<1x8xf32>
    %102 = arith.addf %100, %101 : vector<1x8xf32>
    %103 = vector.extract_strided_slice %85 {offsets = [0, 72], sizes = [1, 8], strides = [1, 1]} : vector<1x112xf32> to vector<1x8xf32>
    %104 = arith.addf %102, %103 : vector<1x8xf32>
    %105 = vector.extract_strided_slice %85 {offsets = [0, 80], sizes = [1, 8], strides = [1, 1]} : vector<1x112xf32> to vector<1x8xf32>
    %106 = arith.addf %104, %105 : vector<1x8xf32>
    %107 = vector.extract_strided_slice %85 {offsets = [0, 88], sizes = [1, 8], strides = [1, 1]} : vector<1x112xf32> to vector<1x8xf32>
    %108 = arith.addf %106, %107 : vector<1x8xf32>
    %109 = vector.extract_strided_slice %85 {offsets = [0, 96], sizes = [1, 8], strides = [1, 1]} : vector<1x112xf32> to vector<1x8xf32>
    %110 = arith.addf %108, %109 : vector<1x8xf32>
    %111 = vector.extract_strided_slice %85 {offsets = [0, 104], sizes = [1, 8], strides = [1, 1]} : vector<1x112xf32> to vector<1x8xf32>
    %112 = arith.addf %110, %111 : vector<1x8xf32>
    %cst_37 = arith.constant 0.00255102036 : f32
    %113 = vector.broadcast %cst_37 : f32 to vector<1x8xf32>
    %114 = arith.mulf %112, %113 : vector<1x8xf32>
    %cst_38 = arith.constant 9.99999974E-6 : f32
    %115 = vector.broadcast %cst_38 : f32 to vector<1x8xf32>
    %116 = arith.addf %114, %115 : vector<1x8xf32>
    %117 = math.rsqrt %116 : vector<1x8xf32>
    %118 = arith.mulf %38, %117 : vector<1x8xf32>
    %119 = tpu.concatenate %118, %118, %118, %118, %118, %118, %118, %118, %118, %118, %118, %118, %118, %118 in 1 : vector<1x8xf32>, vector<1x8xf32>, vector<1x8xf32>, vector<1x8xf32>, vector<1x8xf32>, vector<1x8xf32>, vector<1x8xf32>, vector<1x8xf32>, vector<1x8xf32>, vector<1x8xf32>, vector<1x8xf32>, vector<1x8xf32>, vector<1x8xf32>, vector<1x8xf32> -> vector<1x112xf32>
    %120 = tpu.concatenate %39, %39, %39, %39, %39, %39, %39, %39, %39, %39, %39, %39, %39, %39 in 1 : vector<1x8xf32>, vector<1x8xf32>, vector<1x8xf32>, vector<1x8xf32>, vector<1x8xf32>, vector<1x8xf32>, vector<1x8xf32>, vector<1x8xf32>, vector<1x8xf32>, vector<1x8xf32>, vector<1x8xf32>, vector<1x8xf32>, vector<1x8xf32>, vector<1x8xf32> -> vector<1x112xf32>
    %121 = vector.broadcast %119 : vector<1x112xf32> to vector<14x112xf32>
    %122 = arith.mulf %76, %121 : vector<14x112xf32>
    %123 = vector.broadcast %120 : vector<1x112xf32> to vector<14x112xf32>
    %124 = arith.addf %122, %123 : vector<14x112xf32>
    %cst_39 = arith.constant 0.000000e+00 : f32
    %125 = vector.broadcast %cst_39 : f32 to vector<14x112xf32>
    %126 = arith.maximumf %124, %125 : vector<14x112xf32>
    %127 = vector.broadcast %119 : vector<1x112xf32> to vector<14x112xf32>
    %128 = arith.mulf %78, %127 : vector<14x112xf32>
    %129 = vector.broadcast %120 : vector<1x112xf32> to vector<14x112xf32>
    %130 = arith.addf %128, %129 : vector<14x112xf32>
    %cst_40 = arith.constant 0.000000e+00 : f32
    %131 = vector.broadcast %cst_40 : f32 to vector<14x112xf32>
    %132 = arith.maximumf %130, %131 : vector<14x112xf32>
    %c0_41 = arith.constant 0 : index
    %c0_42 = arith.constant 0 : index
    %133 = vector.load %arg6[%c0_41, %c0_42] : memref<1x8xf32, #tpu.memory_space<vmem>>, vector<1x8xf32>
    %134 = tpu.concatenate %133, %133, %133, %133, %133, %133, %133, %133, %133, %133, %133, %133 in 1 : vector<1x8xf32>, vector<1x8xf32>, vector<1x8xf32>, vector<1x8xf32>, vector<1x8xf32>, vector<1x8xf32>, vector<1x8xf32>, vector<1x8xf32>, vector<1x8xf32>, vector<1x8xf32>, vector<1x8xf32>, vector<1x8xf32> -> vector<1x96xf32>
    %135 = vector.extract_strided_slice %126 {offsets = [0, 0], sizes = [12, 112], strides = [1, 1]} : vector<14x112xf32> to vector<12x112xf32>
    %c0_43 = arith.constant 0 : index
    %c0_44 = arith.constant 0 : index
    %c0_45 = arith.constant 0 : index
    %136 = vector.load %arg5[%c0_43, %c0_44, %c0_45] : memref<3x112x96xf32, #tpu.memory_space<vmem>>, vector<1x112x96xf32>
    %137 = vector.shape_cast %136 : vector<1x112x96xf32> to vector<112x96xf32>
    %cst_46 = arith.constant dense<0.000000e+00> : vector<12x96xf32>
    %138 = tpu.matmul %135, %137, %cst_46 {dimension_numbers = #tpu.dot_dimension_numbers<[1], [0], [0], [1], [0, 0, 1, 1], [], []>} : vector<12x112xf32>, vector<112x96xf32>, vector<12x96xf32> -> vector<12x96xf32>
    %139 = vector.extract_strided_slice %126 {offsets = [1, 0], sizes = [12, 112], strides = [1, 1]} : vector<14x112xf32> to vector<12x112xf32>
    %c1_47 = arith.constant 1 : index
    %c0_48 = arith.constant 0 : index
    %c0_49 = arith.constant 0 : index
    %140 = vector.load %arg5[%c1_47, %c0_48, %c0_49] : memref<3x112x96xf32, #tpu.memory_space<vmem>>, vector<1x112x96xf32>
    %141 = vector.shape_cast %140 : vector<1x112x96xf32> to vector<112x96xf32>
    %cst_50 = arith.constant dense<0.000000e+00> : vector<12x96xf32>
    %142 = tpu.matmul %139, %141, %cst_50 {dimension_numbers = #tpu.dot_dimension_numbers<[1], [0], [0], [1], [0, 0, 1, 1], [], []>} : vector<12x112xf32>, vector<112x96xf32>, vector<12x96xf32> -> vector<12x96xf32>
    %143 = arith.addf %138, %142 : vector<12x96xf32>
    %144 = vector.extract_strided_slice %126 {offsets = [2, 0], sizes = [12, 112], strides = [1, 1]} : vector<14x112xf32> to vector<12x112xf32>
    %c2_51 = arith.constant 2 : index
    %c0_52 = arith.constant 0 : index
    %c0_53 = arith.constant 0 : index
    %145 = vector.load %arg5[%c2_51, %c0_52, %c0_53] : memref<3x112x96xf32, #tpu.memory_space<vmem>>, vector<1x112x96xf32>
    %146 = vector.shape_cast %145 : vector<1x112x96xf32> to vector<112x96xf32>
    %cst_54 = arith.constant dense<0.000000e+00> : vector<12x96xf32>
    %147 = tpu.matmul %144, %146, %cst_54 {dimension_numbers = #tpu.dot_dimension_numbers<[1], [0], [0], [1], [0, 0, 1, 1], [], []>} : vector<12x112xf32>, vector<112x96xf32>, vector<12x96xf32> -> vector<12x96xf32>
    %148 = arith.addf %143, %147 : vector<12x96xf32>
    %149 = vector.broadcast %134 : vector<1x96xf32> to vector<12x96xf32>
    %150 = arith.addf %148, %149 : vector<12x96xf32>
    %151 = vector.extract_strided_slice %132 {offsets = [0, 0], sizes = [12, 112], strides = [1, 1]} : vector<14x112xf32> to vector<12x112xf32>
    %c0_55 = arith.constant 0 : index
    %c0_56 = arith.constant 0 : index
    %c0_57 = arith.constant 0 : index
    %152 = vector.load %arg5[%c0_55, %c0_56, %c0_57] : memref<3x112x96xf32, #tpu.memory_space<vmem>>, vector<1x112x96xf32>
    %153 = vector.shape_cast %152 : vector<1x112x96xf32> to vector<112x96xf32>
    %cst_58 = arith.constant dense<0.000000e+00> : vector<12x96xf32>
    %154 = tpu.matmul %151, %153, %cst_58 {dimension_numbers = #tpu.dot_dimension_numbers<[1], [0], [0], [1], [0, 0, 1, 1], [], []>} : vector<12x112xf32>, vector<112x96xf32>, vector<12x96xf32> -> vector<12x96xf32>
    %155 = vector.extract_strided_slice %132 {offsets = [1, 0], sizes = [12, 112], strides = [1, 1]} : vector<14x112xf32> to vector<12x112xf32>
    %c1_59 = arith.constant 1 : index
    %c0_60 = arith.constant 0 : index
    %c0_61 = arith.constant 0 : index
    %156 = vector.load %arg5[%c1_59, %c0_60, %c0_61] : memref<3x112x96xf32, #tpu.memory_space<vmem>>, vector<1x112x96xf32>
    %157 = vector.shape_cast %156 : vector<1x112x96xf32> to vector<112x96xf32>
    %cst_62 = arith.constant dense<0.000000e+00> : vector<12x96xf32>
    %158 = tpu.matmul %155, %157, %cst_62 {dimension_numbers = #tpu.dot_dimension_numbers<[1], [0], [0], [1], [0, 0, 1, 1], [], []>} : vector<12x112xf32>, vector<112x96xf32>, vector<12x96xf32> -> vector<12x96xf32>
    %159 = arith.addf %154, %158 : vector<12x96xf32>
    %160 = vector.extract_strided_slice %132 {offsets = [2, 0], sizes = [12, 112], strides = [1, 1]} : vector<14x112xf32> to vector<12x112xf32>
    %c2_63 = arith.constant 2 : index
    %c0_64 = arith.constant 0 : index
    %c0_65 = arith.constant 0 : index
    %161 = vector.load %arg5[%c2_63, %c0_64, %c0_65] : memref<3x112x96xf32, #tpu.memory_space<vmem>>, vector<1x112x96xf32>
    %162 = vector.shape_cast %161 : vector<1x112x96xf32> to vector<112x96xf32>
    %cst_66 = arith.constant dense<0.000000e+00> : vector<12x96xf32>
    %163 = tpu.matmul %160, %162, %cst_66 {dimension_numbers = #tpu.dot_dimension_numbers<[1], [0], [0], [1], [0, 0, 1, 1], [], []>} : vector<12x112xf32>, vector<112x96xf32>, vector<12x96xf32> -> vector<12x96xf32>
    %164 = arith.addf %159, %163 : vector<12x96xf32>
    %165 = vector.broadcast %134 : vector<1x96xf32> to vector<12x96xf32>
    %166 = arith.addf %164, %165 : vector<12x96xf32>
    %c0_67 = arith.constant 0 : index
    %c0_68 = arith.constant 0 : index
    %167 = vector.load %arg7[%c0_67, %c0_68] : memref<1x8xf32, #tpu.memory_space<vmem>>, vector<1x8xf32>
    %c0_69 = arith.constant 0 : index
    %c0_70 = arith.constant 0 : index
    %168 = vector.load %arg8[%c0_69, %c0_70] : memref<1x8xf32, #tpu.memory_space<vmem>>, vector<1x8xf32>
    %cst_71 = arith.constant dense<0.000000e+00> : vector<96xf32>
    %169 = vector.multi_reduction <add>, %150, %cst_71 [0] : vector<12x96xf32> to vector<96xf32>
    %170 = vector.shape_cast %169 : vector<96xf32> to vector<1x96xf32>
    %cst_72 = arith.constant dense<0.000000e+00> : vector<96xf32>
    %171 = vector.multi_reduction <add>, %166, %cst_72 [0] : vector<12x96xf32> to vector<96xf32>
    %172 = vector.shape_cast %171 : vector<96xf32> to vector<1x96xf32>
    %173 = arith.addf %170, %172 : vector<1x96xf32>
    %174 = vector.extract_strided_slice %173 {offsets = [0, 0], sizes = [1, 8], strides = [1, 1]} : vector<1x96xf32> to vector<1x8xf32>
    %175 = vector.extract_strided_slice %173 {offsets = [0, 8], sizes = [1, 8], strides = [1, 1]} : vector<1x96xf32> to vector<1x8xf32>
    %176 = arith.addf %174, %175 : vector<1x8xf32>
    %177 = vector.extract_strided_slice %173 {offsets = [0, 16], sizes = [1, 8], strides = [1, 1]} : vector<1x96xf32> to vector<1x8xf32>
    %178 = arith.addf %176, %177 : vector<1x8xf32>
    %179 = vector.extract_strided_slice %173 {offsets = [0, 24], sizes = [1, 8], strides = [1, 1]} : vector<1x96xf32> to vector<1x8xf32>
    %180 = arith.addf %178, %179 : vector<1x8xf32>
    %181 = vector.extract_strided_slice %173 {offsets = [0, 32], sizes = [1, 8], strides = [1, 1]} : vector<1x96xf32> to vector<1x8xf32>
    %182 = arith.addf %180, %181 : vector<1x8xf32>
    %183 = vector.extract_strided_slice %173 {offsets = [0, 40], sizes = [1, 8], strides = [1, 1]} : vector<1x96xf32> to vector<1x8xf32>
    %184 = arith.addf %182, %183 : vector<1x8xf32>
    %185 = vector.extract_strided_slice %173 {offsets = [0, 48], sizes = [1, 8], strides = [1, 1]} : vector<1x96xf32> to vector<1x8xf32>
    %186 = arith.addf %184, %185 : vector<1x8xf32>
    %187 = vector.extract_strided_slice %173 {offsets = [0, 56], sizes = [1, 8], strides = [1, 1]} : vector<1x96xf32> to vector<1x8xf32>
    %188 = arith.addf %186, %187 : vector<1x8xf32>
    %189 = vector.extract_strided_slice %173 {offsets = [0, 64], sizes = [1, 8], strides = [1, 1]} : vector<1x96xf32> to vector<1x8xf32>
    %190 = arith.addf %188, %189 : vector<1x8xf32>
    %191 = vector.extract_strided_slice %173 {offsets = [0, 72], sizes = [1, 8], strides = [1, 1]} : vector<1x96xf32> to vector<1x8xf32>
    %192 = arith.addf %190, %191 : vector<1x8xf32>
    %193 = vector.extract_strided_slice %173 {offsets = [0, 80], sizes = [1, 8], strides = [1, 1]} : vector<1x96xf32> to vector<1x8xf32>
    %194 = arith.addf %192, %193 : vector<1x8xf32>
    %195 = vector.extract_strided_slice %173 {offsets = [0, 88], sizes = [1, 8], strides = [1, 1]} : vector<1x96xf32> to vector<1x8xf32>
    %196 = arith.addf %194, %195 : vector<1x8xf32>
    %cst_73 = arith.constant 0.00347222225 : f32
    %197 = vector.broadcast %cst_73 : f32 to vector<1x8xf32>
    %198 = arith.mulf %196, %197 : vector<1x8xf32>
    %199 = tpu.concatenate %198, %198, %198, %198, %198, %198, %198, %198, %198, %198, %198, %198 in 1 : vector<1x8xf32>, vector<1x8xf32>, vector<1x8xf32>, vector<1x8xf32>, vector<1x8xf32>, vector<1x8xf32>, vector<1x8xf32>, vector<1x8xf32>, vector<1x8xf32>, vector<1x8xf32>, vector<1x8xf32>, vector<1x8xf32> -> vector<1x96xf32>
    %200 = vector.broadcast %199 : vector<1x96xf32> to vector<12x96xf32>
    %201 = arith.subf %150, %200 : vector<12x96xf32>
    %202 = vector.broadcast %199 : vector<1x96xf32> to vector<12x96xf32>
    %203 = arith.subf %166, %202 : vector<12x96xf32>
    %204 = arith.mulf %201, %201 : vector<12x96xf32>
    %cst_74 = arith.constant dense<0.000000e+00> : vector<96xf32>
    %205 = vector.multi_reduction <add>, %204, %cst_74 [0] : vector<12x96xf32> to vector<96xf32>
    %206 = vector.shape_cast %205 : vector<96xf32> to vector<1x96xf32>
    %207 = arith.mulf %203, %203 : vector<12x96xf32>
    %cst_75 = arith.constant dense<0.000000e+00> : vector<96xf32>
    %208 = vector.multi_reduction <add>, %207, %cst_75 [0] : vector<12x96xf32> to vector<96xf32>
    %209 = vector.shape_cast %208 : vector<96xf32> to vector<1x96xf32>
    %210 = arith.addf %206, %209 : vector<1x96xf32>
    %211 = vector.extract_strided_slice %210 {offsets = [0, 0], sizes = [1, 8], strides = [1, 1]} : vector<1x96xf32> to vector<1x8xf32>
    %212 = vector.extract_strided_slice %210 {offsets = [0, 8], sizes = [1, 8], strides = [1, 1]} : vector<1x96xf32> to vector<1x8xf32>
    %213 = arith.addf %211, %212 : vector<1x8xf32>
    %214 = vector.extract_strided_slice %210 {offsets = [0, 16], sizes = [1, 8], strides = [1, 1]} : vector<1x96xf32> to vector<1x8xf32>
    %215 = arith.addf %213, %214 : vector<1x8xf32>
    %216 = vector.extract_strided_slice %210 {offsets = [0, 24], sizes = [1, 8], strides = [1, 1]} : vector<1x96xf32> to vector<1x8xf32>
    %217 = arith.addf %215, %216 : vector<1x8xf32>
    %218 = vector.extract_strided_slice %210 {offsets = [0, 32], sizes = [1, 8], strides = [1, 1]} : vector<1x96xf32> to vector<1x8xf32>
    %219 = arith.addf %217, %218 : vector<1x8xf32>
    %220 = vector.extract_strided_slice %210 {offsets = [0, 40], sizes = [1, 8], strides = [1, 1]} : vector<1x96xf32> to vector<1x8xf32>
    %221 = arith.addf %219, %220 : vector<1x8xf32>
    %222 = vector.extract_strided_slice %210 {offsets = [0, 48], sizes = [1, 8], strides = [1, 1]} : vector<1x96xf32> to vector<1x8xf32>
    %223 = arith.addf %221, %222 : vector<1x8xf32>
    %224 = vector.extract_strided_slice %210 {offsets = [0, 56], sizes = [1, 8], strides = [1, 1]} : vector<1x96xf32> to vector<1x8xf32>
    %225 = arith.addf %223, %224 : vector<1x8xf32>
    %226 = vector.extract_strided_slice %210 {offsets = [0, 64], sizes = [1, 8], strides = [1, 1]} : vector<1x96xf32> to vector<1x8xf32>
    %227 = arith.addf %225, %226 : vector<1x8xf32>
    %228 = vector.extract_strided_slice %210 {offsets = [0, 72], sizes = [1, 8], strides = [1, 1]} : vector<1x96xf32> to vector<1x8xf32>
    %229 = arith.addf %227, %228 : vector<1x8xf32>
    %230 = vector.extract_strided_slice %210 {offsets = [0, 80], sizes = [1, 8], strides = [1, 1]} : vector<1x96xf32> to vector<1x8xf32>
    %231 = arith.addf %229, %230 : vector<1x8xf32>
    %232 = vector.extract_strided_slice %210 {offsets = [0, 88], sizes = [1, 8], strides = [1, 1]} : vector<1x96xf32> to vector<1x8xf32>
    %233 = arith.addf %231, %232 : vector<1x8xf32>
    %cst_76 = arith.constant 0.00347222225 : f32
    %234 = vector.broadcast %cst_76 : f32 to vector<1x8xf32>
    %235 = arith.mulf %233, %234 : vector<1x8xf32>
    %cst_77 = arith.constant 9.99999974E-6 : f32
    %236 = vector.broadcast %cst_77 : f32 to vector<1x8xf32>
    %237 = arith.addf %235, %236 : vector<1x8xf32>
    %238 = math.rsqrt %237 : vector<1x8xf32>
    %239 = arith.mulf %167, %238 : vector<1x8xf32>
    %240 = tpu.concatenate %239, %239, %239, %239, %239, %239, %239, %239, %239, %239, %239, %239 in 1 : vector<1x8xf32>, vector<1x8xf32>, vector<1x8xf32>, vector<1x8xf32>, vector<1x8xf32>, vector<1x8xf32>, vector<1x8xf32>, vector<1x8xf32>, vector<1x8xf32>, vector<1x8xf32>, vector<1x8xf32>, vector<1x8xf32> -> vector<1x96xf32>
    %241 = tpu.concatenate %168, %168, %168, %168, %168, %168, %168, %168, %168, %168, %168, %168 in 1 : vector<1x8xf32>, vector<1x8xf32>, vector<1x8xf32>, vector<1x8xf32>, vector<1x8xf32>, vector<1x8xf32>, vector<1x8xf32>, vector<1x8xf32>, vector<1x8xf32>, vector<1x8xf32>, vector<1x8xf32>, vector<1x8xf32> -> vector<1x96xf32>
    %242 = vector.broadcast %240 : vector<1x96xf32> to vector<12x96xf32>
    %243 = arith.mulf %201, %242 : vector<12x96xf32>
    %244 = vector.broadcast %241 : vector<1x96xf32> to vector<12x96xf32>
    %245 = arith.addf %243, %244 : vector<12x96xf32>
    %cst_78 = arith.constant 0.000000e+00 : f32
    %246 = vector.broadcast %cst_78 : f32 to vector<12x96xf32>
    %247 = arith.maximumf %245, %246 : vector<12x96xf32>
    %248 = vector.broadcast %240 : vector<1x96xf32> to vector<12x96xf32>
    %249 = arith.mulf %203, %248 : vector<12x96xf32>
    %250 = vector.broadcast %241 : vector<1x96xf32> to vector<12x96xf32>
    %251 = arith.addf %249, %250 : vector<12x96xf32>
    %cst_79 = arith.constant 0.000000e+00 : f32
    %252 = vector.broadcast %cst_79 : f32 to vector<12x96xf32>
    %253 = arith.maximumf %251, %252 : vector<12x96xf32>
    %c0_80 = arith.constant 0 : index
    %c0_81 = arith.constant 0 : index
    %c0_82 = arith.constant 0 : index
    %254 = vector.load %arg9[%c0_80, %c0_81, %c0_82] : memref<2x12x96xf32, #tpu.memory_space<vmem>>, vector<1x12x96xf32>
    %255 = vector.shape_cast %254 : vector<1x12x96xf32> to vector<12x96xf32>
    %256 = vector.shape_cast %247 : vector<12x96xf32> to vector<1x12x96xf32>
    tpu.vector_store %arg9[%c0_80, %c0_81, %c0_82], %256 {strides = array<i32>} : memref<2x12x96xf32, #tpu.memory_space<vmem>>, vector<1x12x96xf32>,
    %257 = vector.extract_strided_slice %247 {offsets = [0, 0], sizes = [12, 8], strides = [1, 1]} : vector<12x96xf32> to vector<12x8xf32>
    %258 = vector.extract_strided_slice %247 {offsets = [0, 8], sizes = [12, 8], strides = [1, 1]} : vector<12x96xf32> to vector<12x8xf32>
    %259 = arith.maximumf %257, %258 : vector<12x8xf32>
    %260 = vector.extract_strided_slice %247 {offsets = [0, 16], sizes = [12, 8], strides = [1, 1]} : vector<12x96xf32> to vector<12x8xf32>
    %261 = vector.extract_strided_slice %247 {offsets = [0, 24], sizes = [12, 8], strides = [1, 1]} : vector<12x96xf32> to vector<12x8xf32>
    %262 = arith.maximumf %260, %261 : vector<12x8xf32>
    %263 = vector.extract_strided_slice %247 {offsets = [0, 32], sizes = [12, 8], strides = [1, 1]} : vector<12x96xf32> to vector<12x8xf32>
    %264 = vector.extract_strided_slice %247 {offsets = [0, 40], sizes = [12, 8], strides = [1, 1]} : vector<12x96xf32> to vector<12x8xf32>
    %265 = arith.maximumf %263, %264 : vector<12x8xf32>
    %266 = vector.extract_strided_slice %247 {offsets = [0, 48], sizes = [12, 8], strides = [1, 1]} : vector<12x96xf32> to vector<12x8xf32>
    %267 = vector.extract_strided_slice %247 {offsets = [0, 56], sizes = [12, 8], strides = [1, 1]} : vector<12x96xf32> to vector<12x8xf32>
    %268 = arith.maximumf %266, %267 : vector<12x8xf32>
    %269 = vector.extract_strided_slice %247 {offsets = [0, 64], sizes = [12, 8], strides = [1, 1]} : vector<12x96xf32> to vector<12x8xf32>
    %270 = vector.extract_strided_slice %247 {offsets = [0, 72], sizes = [12, 8], strides = [1, 1]} : vector<12x96xf32> to vector<12x8xf32>
    %271 = arith.maximumf %269, %270 : vector<12x8xf32>
    %272 = vector.extract_strided_slice %247 {offsets = [0, 80], sizes = [12, 8], strides = [1, 1]} : vector<12x96xf32> to vector<12x8xf32>
    %273 = vector.extract_strided_slice %247 {offsets = [0, 88], sizes = [12, 8], strides = [1, 1]} : vector<12x96xf32> to vector<12x8xf32>
    %274 = arith.maximumf %272, %273 : vector<12x8xf32>
    %275 = tpu.concatenate %259, %262, %265, %268, %271, %274 in 1 : vector<12x8xf32>, vector<12x8xf32>, vector<12x8xf32>, vector<12x8xf32>, vector<12x8xf32>, vector<12x8xf32> -> vector<12x48xf32>
    %276 = vector.extract_strided_slice %275 {offsets = [0, 0], sizes = [1, 48], strides = [1, 1]} : vector<12x48xf32> to vector<1x48xf32>
    %277 = vector.extract_strided_slice %275 {offsets = [1, 0], sizes = [1, 48], strides = [1, 1]} : vector<12x48xf32> to vector<1x48xf32>
    %278 = arith.maximumf %276, %277 : vector<1x48xf32>
    %279 = vector.extract_strided_slice %275 {offsets = [2, 0], sizes = [1, 48], strides = [1, 1]} : vector<12x48xf32> to vector<1x48xf32>
    %280 = vector.extract_strided_slice %275 {offsets = [3, 0], sizes = [1, 48], strides = [1, 1]} : vector<12x48xf32> to vector<1x48xf32>
    %281 = arith.maximumf %279, %280 : vector<1x48xf32>
    %282 = vector.extract_strided_slice %275 {offsets = [4, 0], sizes = [1, 48], strides = [1, 1]} : vector<12x48xf32> to vector<1x48xf32>
    %283 = vector.extract_strided_slice %275 {offsets = [5, 0], sizes = [1, 48], strides = [1, 1]} : vector<12x48xf32> to vector<1x48xf32>
    %284 = arith.maximumf %282, %283 : vector<1x48xf32>
    %285 = vector.extract_strided_slice %275 {offsets = [6, 0], sizes = [1, 48], strides = [1, 1]} : vector<12x48xf32> to vector<1x48xf32>
    %286 = vector.extract_strided_slice %275 {offsets = [7, 0], sizes = [1, 48], strides = [1, 1]} : vector<12x48xf32> to vector<1x48xf32>
    %287 = arith.maximumf %285, %286 : vector<1x48xf32>
    %288 = vector.extract_strided_slice %275 {offsets = [8, 0], sizes = [1, 48], strides = [1, 1]} : vector<12x48xf32> to vector<1x48xf32>
    %289 = vector.extract_strided_slice %275 {offsets = [9, 0], sizes = [1, 48], strides = [1, 1]} : vector<12x48xf32> to vector<1x48xf32>
    %290 = arith.maximumf %288, %289 : vector<1x48xf32>
    %291 = vector.extract_strided_slice %275 {offsets = [10, 0], sizes = [1, 48], strides = [1, 1]} : vector<12x48xf32> to vector<1x48xf32>
    %292 = vector.extract_strided_slice %275 {offsets = [11, 0], sizes = [1, 48], strides = [1, 1]} : vector<12x48xf32> to vector<1x48xf32>
    %293 = arith.maximumf %291, %292 : vector<1x48xf32>
    %294 = tpu.concatenate %278, %281, %284, %287, %290, %293 in 0 : vector<1x48xf32>, vector<1x48xf32>, vector<1x48xf32>, vector<1x48xf32>, vector<1x48xf32>, vector<1x48xf32> -> vector<6x48xf32>
    %c0_83 = arith.constant 0 : index
    %c0_84 = arith.constant 0 : index
    %c0_85 = arith.constant 0 : index
    %295 = vector.load %arg10[%c0_83, %c0_84, %c0_85] : memref<2x6x48xf32, #tpu.memory_space<vmem>>, vector<1x6x48xf32>
    %296 = vector.shape_cast %295 : vector<1x6x48xf32> to vector<6x48xf32>
    %297 = vector.shape_cast %294 : vector<6x48xf32> to vector<1x6x48xf32>
    tpu.vector_store %arg10[%c0_83, %c0_84, %c0_85], %297 {strides = array<i32>} : memref<2x6x48xf32, #tpu.memory_space<vmem>>, vector<1x6x48xf32>,
    %c1_86 = arith.constant 1 : index
    %c0_87 = arith.constant 0 : index
    %c0_88 = arith.constant 0 : index
    %298 = vector.load %arg9[%c1_86, %c0_87, %c0_88] : memref<2x12x96xf32, #tpu.memory_space<vmem>>, vector<1x12x96xf32>
    %299 = vector.shape_cast %298 : vector<1x12x96xf32> to vector<12x96xf32>
    %300 = vector.shape_cast %253 : vector<12x96xf32> to vector<1x12x96xf32>
    tpu.vector_store %arg9[%c1_86, %c0_87, %c0_88], %300 {strides = array<i32>} : memref<2x12x96xf32, #tpu.memory_space<vmem>>, vector<1x12x96xf32>,
    %301 = vector.extract_strided_slice %253 {offsets = [0, 0], sizes = [12, 8], strides = [1, 1]} : vector<12x96xf32> to vector<12x8xf32>
    %302 = vector.extract_strided_slice %253 {offsets = [0, 8], sizes = [12, 8], strides = [1, 1]} : vector<12x96xf32> to vector<12x8xf32>
    %303 = arith.maximumf %301, %302 : vector<12x8xf32>
    %304 = vector.extract_strided_slice %253 {offsets = [0, 16], sizes = [12, 8], strides = [1, 1]} : vector<12x96xf32> to vector<12x8xf32>
    %305 = vector.extract_strided_slice %253 {offsets = [0, 24], sizes = [12, 8], strides = [1, 1]} : vector<12x96xf32> to vector<12x8xf32>
    %306 = arith.maximumf %304, %305 : vector<12x8xf32>
    %307 = vector.extract_strided_slice %253 {offsets = [0, 32], sizes = [12, 8], strides = [1, 1]} : vector<12x96xf32> to vector<12x8xf32>
    %308 = vector.extract_strided_slice %253 {offsets = [0, 40], sizes = [12, 8], strides = [1, 1]} : vector<12x96xf32> to vector<12x8xf32>
    %309 = arith.maximumf %307, %308 : vector<12x8xf32>
    %310 = vector.extract_strided_slice %253 {offsets = [0, 48], sizes = [12, 8], strides = [1, 1]} : vector<12x96xf32> to vector<12x8xf32>
    %311 = vector.extract_strided_slice %253 {offsets = [0, 56], sizes = [12, 8], strides = [1, 1]} : vector<12x96xf32> to vector<12x8xf32>
    %312 = arith.maximumf %310, %311 : vector<12x8xf32>
    %313 = vector.extract_strided_slice %253 {offsets = [0, 64], sizes = [12, 8], strides = [1, 1]} : vector<12x96xf32> to vector<12x8xf32>
    %314 = vector.extract_strided_slice %253 {offsets = [0, 72], sizes = [12, 8], strides = [1, 1]} : vector<12x96xf32> to vector<12x8xf32>
    %315 = arith.maximumf %313, %314 : vector<12x8xf32>
    %316 = vector.extract_strided_slice %253 {offsets = [0, 80], sizes = [12, 8], strides = [1, 1]} : vector<12x96xf32> to vector<12x8xf32>
    %317 = vector.extract_strided_slice %253 {offsets = [0, 88], sizes = [12, 8], strides = [1, 1]} : vector<12x96xf32> to vector<12x8xf32>
    %318 = arith.maximumf %316, %317 : vector<12x8xf32>
    %319 = tpu.concatenate %303, %306, %309, %312, %315, %318 in 1 : vector<12x8xf32>, vector<12x8xf32>, vector<12x8xf32>, vector<12x8xf32>, vector<12x8xf32>, vector<12x8xf32> -> vector<12x48xf32>
    %320 = vector.extract_strided_slice %319 {offsets = [0, 0], sizes = [1, 48], strides = [1, 1]} : vector<12x48xf32> to vector<1x48xf32>
    %321 = vector.extract_strided_slice %319 {offsets = [1, 0], sizes = [1, 48], strides = [1, 1]} : vector<12x48xf32> to vector<1x48xf32>
    %322 = arith.maximumf %320, %321 : vector<1x48xf32>
    %323 = vector.extract_strided_slice %319 {offsets = [2, 0], sizes = [1, 48], strides = [1, 1]} : vector<12x48xf32> to vector<1x48xf32>
    %324 = vector.extract_strided_slice %319 {offsets = [3, 0], sizes = [1, 48], strides = [1, 1]} : vector<12x48xf32> to vector<1x48xf32>
    %325 = arith.maximumf %323, %324 : vector<1x48xf32>
    %326 = vector.extract_strided_slice %319 {offsets = [4, 0], sizes = [1, 48], strides = [1, 1]} : vector<12x48xf32> to vector<1x48xf32>
    %327 = vector.extract_strided_slice %319 {offsets = [5, 0], sizes = [1, 48], strides = [1, 1]} : vector<12x48xf32> to vector<1x48xf32>
    %328 = arith.maximumf %326, %327 : vector<1x48xf32>
    %329 = vector.extract_strided_slice %319 {offsets = [6, 0], sizes = [1, 48], strides = [1, 1]} : vector<12x48xf32> to vector<1x48xf32>
    %330 = vector.extract_strided_slice %319 {offsets = [7, 0], sizes = [1, 48], strides = [1, 1]} : vector<12x48xf32> to vector<1x48xf32>
    %331 = arith.maximumf %329, %330 : vector<1x48xf32>
    %332 = vector.extract_strided_slice %319 {offsets = [8, 0], sizes = [1, 48], strides = [1, 1]} : vector<12x48xf32> to vector<1x48xf32>
    %333 = vector.extract_strided_slice %319 {offsets = [9, 0], sizes = [1, 48], strides = [1, 1]} : vector<12x48xf32> to vector<1x48xf32>
    %334 = arith.maximumf %332, %333 : vector<1x48xf32>
    %335 = vector.extract_strided_slice %319 {offsets = [10, 0], sizes = [1, 48], strides = [1, 1]} : vector<12x48xf32> to vector<1x48xf32>
    %336 = vector.extract_strided_slice %319 {offsets = [11, 0], sizes = [1, 48], strides = [1, 1]} : vector<12x48xf32> to vector<1x48xf32>
    %337 = arith.maximumf %335, %336 : vector<1x48xf32>
    %338 = tpu.concatenate %322, %325, %328, %331, %334, %337 in 0 : vector<1x48xf32>, vector<1x48xf32>, vector<1x48xf32>, vector<1x48xf32>, vector<1x48xf32>, vector<1x48xf32> -> vector<6x48xf32>
    %c1_89 = arith.constant 1 : index
    %c0_90 = arith.constant 0 : index
    %c0_91 = arith.constant 0 : index
    %339 = vector.load %arg10[%c1_89, %c0_90, %c0_91] : memref<2x6x48xf32, #tpu.memory_space<vmem>>, vector<1x6x48xf32>
    %340 = vector.shape_cast %339 : vector<1x6x48xf32> to vector<6x48xf32>
    %341 = vector.shape_cast %338 : vector<6x48xf32> to vector<1x6x48xf32>
    tpu.vector_store %arg10[%c1_89, %c0_90, %c0_91], %341 {strides = array<i32>} : memref<2x6x48xf32, #tpu.memory_space<vmem>>, vector<1x6x48xf32>,
    return
  }
}

</mosaic_0001>

<llo_original>
// kernel: encoder_block_forward.1
$region0: #{encoder_block_forward.1}
  #allocation0 [shape = 'u32[]', space=smem, size = 0x4, offset = 0x4, fixed_abs, tag = 'smem constant byte address 0x4 - core index']
  #allocation1 [shape = 'u32[72,128]{1,0:T(1,128)}', space=vmem, size = 0x9000, scoped, tag = 'internal scratch']
  %s0 = inlined_call_operand.vmem [shape: f32[2,16,64], index: 0, kind: input, shape index: {}]
  %s1 = inlined_call_operand.vmem [shape: f32[3,64,112], index: 1, kind: input, shape index: {}]
  %s2 = inlined_call_operand.vmem [shape: f32[1,8], index: 2, kind: input, shape index: {}]
  %s3 = inlined_call_operand.vmem [shape: f32[1,8], index: 3, kind: input, shape index: {}]
  %s4 = inlined_call_operand.vmem [shape: f32[1,8], index: 4, kind: input, shape index: {}]
  %s5 = inlined_call_operand.vmem [shape: f32[3,112,96], index: 5, kind: input, shape index: {}]
  %s6 = inlined_call_operand.vmem [shape: f32[1,8], index: 6, kind: input, shape index: {}]
  %s7 = inlined_call_operand.vmem [shape: f32[1,8], index: 7, kind: input, shape index: {}]
  %s8 = inlined_call_operand.vmem [shape: f32[1,8], index: 8, kind: input, shape index: {}]
  %s9 = inlined_call_operand.vmem [shape: f32[2,12,96], index: 9, kind: output, shape index: {0}]
  %s10 = inlined_call_operand.vmem [shape: f32[2,6,48], index: 10, kind: output, shape index: {1}]
  %11 = xla_tuple %s9, %s10
  %s12 = sld [smem:[#allocation0]]
  $region54: #{encoder_block_forward.1} parent=0
    _
  %s14 = ssub.s32 1, %s12
  %s15 = scalar_select 0, %s14, %s12
  // Predicated region
  $region2: #{encoder_block_forward.1} parent=0 // pred_check
    _
  $region3: #{encoder_block_forward.1} parent=0 // pred_check_branch
    %17 = sbr.rel (0) target = $region5
  $region4: #{encoder_block_forward.1} parent=0 // pred_region
    _
  $region5: #{encoder_block_forward.1} parent=0 // pred_fallthru
    _
  // Predicated region
  $region6: #{encoder_block_forward.1} parent=0 // pred_check
    _
  $region7: #{encoder_block_forward.1} parent=0 // pred_check_branch
    %19 = sbr.rel (0) target = $region9
  $region8: #{encoder_block_forward.1} parent=0 // pred_region
    _
  $region9: #{encoder_block_forward.1} parent=0 // pred_fallthru
    _
  // Predicated region
  $region10: #{encoder_block_forward.1} parent=0 // pred_check
    _
  $region11: #{encoder_block_forward.1} parent=0 // pred_check_branch
    %21 = sbr.rel (0) target = $region13
  $region12: #{encoder_block_forward.1} parent=0 // pred_region
    _
  $region13: #{encoder_block_forward.1} parent=0 // pred_fallthru
    _
  // Predicated region
  $region14: #{encoder_block_forward.1} parent=0 // pred_check
    _
  $region15: #{encoder_block_forward.1} parent=0 // pred_check_branch
    %23 = sbr.rel (0) target = $region17
  $region16: #{encoder_block_forward.1} parent=0 // pred_region
    _
  $region17: #{encoder_block_forward.1} parent=0 // pred_fallthru
    _
  // Predicated region
  $region18: #{encoder_block_forward.1} parent=0 // pred_check
    _
  $region19: #{encoder_block_forward.1} parent=0 // pred_check_branch
    %25 = sbr.rel (0) target = $region21
  $region20: #{encoder_block_forward.1} parent=0 // pred_region
    _
  $region21: #{encoder_block_forward.1} parent=0 // pred_fallthru
    _
  // Predicated region
  $region22: #{encoder_block_forward.1} parent=0 // pred_check
    _
  $region23: #{encoder_block_forward.1} parent=0 // pred_check_branch
    %27 = sbr.rel (0) target = $region25
  $region24: #{encoder_block_forward.1} parent=0 // pred_region
    _
  $region25: #{encoder_block_forward.1} parent=0 // pred_fallthru
    _
  // Predicated region
  $region26: #{encoder_block_forward.1} parent=0 // pred_check
    _
  $region27: #{encoder_block_forward.1} parent=0 // pred_check_branch
    %29 = sbr.rel (0) target = $region29
  $region28: #{encoder_block_forward.1} parent=0 // pred_region
    _
  $region29: #{encoder_block_forward.1} parent=0 // pred_fallthru
    _
  // Predicated region
  $region30: #{encoder_block_forward.1} parent=0 // pred_check
    _
  $region31: #{encoder_block_forward.1} parent=0 // pred_check_branch
    %31 = sbr.rel (0) target = $region33
  $region32: #{encoder_block_forward.1} parent=0 // pred_region
    _
  $region33: #{encoder_block_forward.1} parent=0 // pred_fallthru
    _
  // Predicated region
  $region34: #{encoder_block_forward.1} parent=0 // pred_check
    _
  $region35: #{encoder_block_forward.1} parent=0 // pred_check_branch
    %33 = sbr.rel (0) target = $region37
  $region36: #{encoder_block_forward.1} parent=0 // pred_region
    _
  $region37: #{encoder_block_forward.1} parent=0 // pred_fallthru
    _
  %v34 = vld [vmem:[%s2] sm:$0x1]
  %v36 = vperm.slane %v34, 0
  %37 = vrot.lane.b32.xlu0 %v36, 8
  %v38 = vpop.permute.xlu0 %37
  %40 = vrot.lane.b32.xlu0 %v36, 16
  %v41 = vpop.permute.xlu0 %40
  %43 = vrot.lane.b32.xlu0 %v36, 24
  %v44 = vpop.permute.xlu0 %43
  %46 = vrot.lane.b32.xlu0 %v36, 32
  %v47 = vpop.permute.xlu0 %46
  %49 = vrot.lane.b32.xlu0 %v36, 40
  %v50 = vpop.permute.xlu0 %49
  %52 = vrot.lane.b32.xlu0 %v36, 48
  %v53 = vpop.permute.xlu0 %52
  %55 = vrot.lane.b32.xlu0 %v36, 56
  %v56 = vpop.permute.xlu0 %55
  %58 = vrot.lane.b32.xlu0 %v36, 64
  %v59 = vpop.permute.xlu0 %58
  %61 = vrot.lane.b32.xlu0 %v36, 72
  %v62 = vpop.permute.xlu0 %61
  %64 = vrot.lane.b32.xlu0 %v36, 80
  %v65 = vpop.permute.xlu0 %64
  %67 = vrot.lane.b32.xlu0 %v36, 88
  %v68 = vpop.permute.xlu0 %67
  %70 = vrot.lane.b32.xlu0 %v36, 96
  %v71 = vpop.permute.xlu0 %70
  %73 = vrot.lane.b32.xlu0 %v36, 104
  %v74 = vpop.permute.xlu0 %73
  %vm76 = vcmask 64512
  %v77 = vsel %vm76, %v34, %v38
  %vm78 = vcmask 130048
  %v79 = vsel %vm78, %v77, %v41
  %vm80 = vcmask 195584
  %v81 = vsel %vm80, %v79, %v44
  %vm82 = vcmask 261120
  %v83 = vsel %vm82, %v81, %v47
  %vm84 = vcmask 326656
  %v85 = vsel %vm84, %v83, %v50
  %vm86 = vcmask 392192
  %v87 = vsel %vm86, %v85, %v53
  %vm88 = vcmask 457728
  %v89 = vsel %vm88, %v87, %v56
  %vm90 = vcmask 523264
  %v91 = vsel %vm90, %v89, %v59
  %vm92 = vcmask 588800
  %v93 = vsel %vm92, %v91, %v62
  %vm94 = vcmask 654336
  %v95 = vsel %vm94, %v93, %v65
  %vm96 = vcmask 719872
  %v97 = vsel %vm96, %v95, %v68
  %vm98 = vcmask 785408
  %v99 = vsel %vm98, %v97, %v71
  %vm100 = vcmask 850944
  %v101 = vsel %vm100, %v99, %v74
  %v102 = vld [vmem:[%s0] sm:$0xff]
  %v103 = vld [vmem:[%s0 + $0x8] sm:$0xff]
  %v104 = vld [vmem:[%s1] sm:$0xff]
  %v105 = vld [vmem:[%s1 + $0x8] sm:$0xff]
  %v106 = vld [vmem:[%s1 + $0x10] sm:$0xff]
  %v107 = vld [vmem:[%s1 + $0x18] sm:$0xff]
  %v108 = vld [vmem:[%s1 + $0x20] sm:$0xff]
  %v109 = vld [vmem:[%s1 + $0x28] sm:$0xff]
  %v110 = vld [vmem:[%s1 + $0x30] sm:$0xff]
  %v111 = vld [vmem:[%s1 + $0x38] sm:$0xff]
  %s112 = scalar_lea.vmem %s1, 64
  %v113 = vld [vmem:[%s112] sm:$0xff]
  %v114 = vld [vmem:[%s112 + $0x8] sm:$0xff]
  %v115 = vld [vmem:[%s112 + $0x10] sm:$0xff]
  %v116 = vld [vmem:[%s112 + $0x18] sm:$0xff]
  %v117 = vld [vmem:[%s112 + $0x20] sm:$0xff]
  %v118 = vld [vmem:[%s112 + $0x28] sm:$0xff]
  %v119 = vld [vmem:[%s112 + $0x30] sm:$0xff]
  %v120 = vld [vmem:[%s112 + $0x38] sm:$0xff]
  %vm123 = vcmask 1046528
  %v124 = vrot.slane %v102, 1
  %v125 = vrot.slane %v103, 1
  %v126 = vsel %vm123, %v124, %v125
  %v127 = vsel %vm90, %v126, 0
  %v129 = vsel %vm90, %v125, 0
  %131 = vmatpush.msra.mxu0 0.0
  %132 = vmatpush.msra.mxu0 0.0
  %133 = vmatpush.msra.mxu0 0.0
  %134 = vmatpush.msra.mxu0 0.0
  %135 = vmatpush.msra.mxu0 0.0
  %136 = vmatpush.msra.mxu0 0.0
  %137 = vmatpush.msra.mxu0 0.0
  %138 = vmatpush.msra.mxu0 0.0
  %139 = vmatpush.msra.mxu0 %v120
  %140 = vmatpush.msra.mxu0 %v119
  %141 = vmatpush.msra.mxu0 %v118
  %142 = vmatpush.msra.mxu0 %v117
  %143 = vmatpush.msra.mxu0 %v116
  %144 = vmatpush.msra.mxu0 %v115
  %145 = vmatpush.msra.mxu0 %v114
  %146 = vmatpush.msra.mxu0 %v113
  %147 = vmatmul.f32.gmra.mxu0 %v127
  %v148 = vpop.f32.mrf.mxu0
  %v149 = vadd.f32 0.0, %v148
  %150 = vmatmul.f32.gmra.mxu0 %v129
  %v151 = vpop.f32.mrf.mxu0
  %v152 = vadd.f32 0.0, %v151
  %153 = vdwg.mxu0
  %v154 = vsel %vm90, %v102, 0
  %v156 = vsel %vm90, %v103, 0
  %158 = vmatpush.msra.mxu0 0.0
  %159 = vmatpush.msra.mxu0 0.0
  %160 = vmatpush.msra.mxu0 0.0
  %161 = vmatpush.msra.mxu0 0.0
  %162 = vmatpush.msra.mxu0 0.0
  %163 = vmatpush.msra.mxu0 0.0
  %164 = vmatpush.msra.mxu0 0.0
  %165 = vmatpush.msra.mxu0 0.0
  %166 = vmatpush.msra.mxu0 %v111
  %167 = vmatpush.msra.mxu0 %v110
  %168 = vmatpush.msra.mxu0 %v109
  %169 = vmatpush.msra.mxu0 %v108
  %170 = vmatpush.msra.mxu0 %v107
  %171 = vmatpush.msra.mxu0 %v106
  %172 = vmatpush.msra.mxu0 %v105
  %173 = vmatpush.msra.mxu0 %v104
  %174 = vmatmul.f32.gmra.mxu0 %v154
  %v175 = vpop.f32.mrf.mxu0
  %v176 = vadd.f32 %v149, %v175
  %177 = vmatmul.f32.gmra.mxu0 %v156
  %v178 = vpop.f32.mrf.mxu0
  %v179 = vadd.f32 %v152, %v178
  %180 = vdwg.mxu0
  %s181 = scalar_lea.vmem %s1, 128
  %v182 = vld [vmem:[%s181] sm:$0xff]
  %v183 = vld [vmem:[%s181 + $0x8] sm:$0xff]
  %v184 = vld [vmem:[%s181 + $0x10] sm:$0xff]
  %v185 = vld [vmem:[%s181 + $0x18] sm:$0xff]
  %v186 = vld [vmem:[%s181 + $0x20] sm:$0xff]
  %v187 = vld [vmem:[%s181 + $0x28] sm:$0xff]
  %v188 = vld [vmem:[%s181 + $0x30] sm:$0xff]
  %v189 = vld [vmem:[%s181 + $0x38] sm:$0xff]
  %vm190 = vcmask 1045504
  %v191 = vrot.slane %v102, 2
  %v192 = vrot.slane %v103, 2
  %v193 = vsel %vm190, %v191, %v192
  %v194 = vsel %vm90, %v193, 0
  %v196 = vsel %vm90, %v192, 0
  %198 = vmatpush.msra.mxu0 0.0
  %199 = vmatpush.msra.mxu0 0.0
  %200 = vmatpush.msra.mxu0 0.0
  %201 = vmatpush.msra.mxu0 0.0
  %202 = vmatpush.msra.mxu0 0.0
  %203 = vmatpush.msra.mxu0 0.0
  %204 = vmatpush.msra.mxu0 0.0
  %205 = vmatpush.msra.mxu0 0.0
  %206 = vmatpush.msra.mxu0 %v189
  %207 = vmatpush.msra.mxu0 %v188
  %208 = vmatpush.msra.mxu0 %v187
  %209 = vmatpush.msra.mxu0 %v186
  %210 = vmatpush.msra.mxu0 %v185
  %211 = vmatpush.msra.mxu0 %v184
  %212 = vmatpush.msra.mxu0 %v183
  %213 = vmatpush.msra.mxu0 %v182
  %214 = vmatmul.f32.gmra.mxu0 %v194
  %v215 = vpop.f32.mrf.mxu0
  %v216 = vadd.f32 0.0, %v215
  %217 = vmatmul.f32.gmra.mxu0 %v196
  %v218 = vpop.f32.mrf.mxu0
  %v219 = vadd.f32 0.0, %v218
  %220 = vdwg.mxu0
  %v221 = vadd.f32 %v176, %v216
  %v222 = vadd.f32 %v179, %v219
  %v223 = vperm.slane %v101, 0
  %v224 = vadd.f32 %v221, %v223
  %v225 = vadd.f32 %v222, %v223
  %s226 = scalar_lea.vmem %s0, 16
  %v227 = vld [vmem:[%s226] sm:$0xff]
  %v228 = vld [vmem:[%s226 + $0x8] sm:$0xff]
  %v231 = vrot.slane %v227, 1
  %v232 = vrot.slane %v228, 1
  %v233 = vsel %vm123, %v231, %v232
  %v234 = vsel %vm90, %v233, 0
  %v236 = vsel %vm90, %v232, 0
  %238 = vmatpush.msra.mxu0 0.0
  %239 = vmatpush.msra.mxu0 0.0
  %240 = vmatpush.msra.mxu0 0.0
  %241 = vmatpush.msra.mxu0 0.0
  %242 = vmatpush.msra.mxu0 0.0
  %243 = vmatpush.msra.mxu0 0.0
  %244 = vmatpush.msra.mxu0 0.0
  %245 = vmatpush.msra.mxu0 0.0
  %246 = vmatpush.msra.mxu0 %v120
  %247 = vmatpush.msra.mxu0 %v119
  %248 = vmatpush.msra.mxu0 %v118
  %249 = vmatpush.msra.mxu0 %v117
  %250 = vmatpush.msra.mxu0 %v116
  %251 = vmatpush.msra.mxu0 %v115
  %252 = vmatpush.msra.mxu0 %v114
  %253 = vmatpush.msra.mxu0 %v113
  %254 = vmatmul.f32.gmra.mxu0 %v234
  %v255 = vpop.f32.mrf.mxu0
  %v256 = vadd.f32 0.0, %v255
  %257 = vmatmul.f32.gmra.mxu0 %v236
  %v258 = vpop.f32.mrf.mxu0
  %v259 = vadd.f32 0.0, %v258
  %260 = vdwg.mxu0
  %v261 = vsel %vm90, %v227, 0
  %v263 = vsel %vm90, %v228, 0
  %265 = vmatpush.msra.mxu0 0.0
  %266 = vmatpush.msra.mxu0 0.0
  %267 = vmatpush.msra.mxu0 0.0
  %268 = vmatpush.msra.mxu0 0.0
  %269 = vmatpush.msra.mxu0 0.0
  %270 = vmatpush.msra.mxu0 0.0
  %271 = vmatpush.msra.mxu0 0.0
  %272 = vmatpush.msra.mxu0 0.0
  %273 = vmatpush.msra.mxu0 %v111
  %274 = vmatpush.msra.mxu0 %v110
  %275 = vmatpush.msra.mxu0 %v109
  %276 = vmatpush.msra.mxu0 %v108
  %277 = vmatpush.msra.mxu0 %v107
  %278 = vmatpush.msra.mxu0 %v106
  %279 = vmatpush.msra.mxu0 %v105
  %280 = vmatpush.msra.mxu0 %v104
  %281 = vmatmul.f32.gmra.mxu0 %v261
  %v282 = vpop.f32.mrf.mxu0
  %v283 = vadd.f32 %v256, %v282
  %284 = vmatmul.f32.gmra.mxu0 %v263
  %v285 = vpop.f32.mrf.mxu0
  %v286 = vadd.f32 %v259, %v285
  %287 = vdwg.mxu0
  %v288 = vrot.slane %v227, 2
  %v289 = vrot.slane %v228, 2
  %v290 = vsel %vm190, %v288, %v289
  %v291 = vsel %vm90, %v290, 0
  %v293 = vsel %vm90, %v289, 0
  %295 = vmatpush.msra.mxu0 0.0
  %296 = vmatpush.msra.mxu0 0.0
  %297 = vmatpush.msra.mxu0 0.0
  %298 = vmatpush.msra.mxu0 0.0
  %299 = vmatpush.msra.mxu0 0.0
  %300 = vmatpush.msra.mxu0 0.0
  %301 = vmatpush.msra.mxu0 0.0
  %302 = vmatpush.msra.mxu0 0.0
  %303 = vmatpush.msra.mxu0 %v189
  %304 = vmatpush.msra.mxu0 %v188
  %305 = vmatpush.msra.mxu0 %v187
  %306 = vmatpush.msra.mxu0 %v186
  %307 = vmatpush.msra.mxu0 %v185
  %308 = vmatpush.msra.mxu0 %v184
  %309 = vmatpush.msra.mxu0 %v183
  %310 = vmatpush.msra.mxu0 %v182
  %311 = vmatmul.f32.gmra.mxu0 %v291
  %v312 = vpop.f32.mrf.mxu0
  %v313 = vadd.f32 0.0, %v312
  %314 = vmatmul.f32.gmra.mxu0 %v293
  %v315 = vpop.f32.mrf.mxu0
  %v316 = vadd.f32 0.0, %v315
  %317 = vdwg.mxu0
  %v318 = vadd.f32 %v283, %v313
  %v319 = vadd.f32 %v286, %v316
  %v320 = vadd.f32 %v318, %v223
  %v321 = vadd.f32 %v319, %v223
  %v322 = vld [vmem:[%s3] sm:$0x1]
  %v323 = vld [vmem:[%s4] sm:$0x1]
  %vm324 = vcmask 916480
  %v325 = vsel %vm324, %v224, 0.0
  %vm326 = vcmask 914432
  %v327 = vsel %vm326, %v225, 0.0
  %v328 = vadd.f32 %v325, %v327
  %v329 = vrot.slane %v328, 4
  %v330 = vadd.f32 %v328, %v329
  %v331 = vrot.slane %v330, 2
  %v332 = vadd.f32 %v330, %v331
  %v333 = vrot.slane %v332, 1
  %v334 = vadd.f32 %v332, %v333
  %v335 = vsel %vm324, %v320, 0.0
  %v336 = vsel %vm326, %v321, 0.0
  %v337 = vadd.f32 %v335, %v336
  %v338 = vrot.slane %v337, 4
  %v339 = vadd.f32 %v337, %v338
  %v340 = vrot.slane %v339, 2
  %v341 = vadd.f32 %v339, %v340
  %v342 = vrot.slane %v341, 1
  %v343 = vadd.f32 %v341, %v342
  %v344 = vadd.f32 %v334, %v343
  %346 = vrot.lane.b32.xlu0 %v344, 120
  %v347 = vpop.permute.xlu0 %346
  %v349 = vadd.f32 %v344, %v347
  %350 = vrot.lane.b32.xlu0 %v344, 112
  %v351 = vpop.permute.xlu0 %350
  %v353 = vadd.f32 %v349, %v351
  %354 = vrot.lane.b32.xlu0 %v344, 104
  %v355 = vpop.permute.xlu0 %354
  %v357 = vadd.f32 %v353, %v355
  %358 = vrot.lane.b32.xlu0 %v344, 96
  %v359 = vpop.permute.xlu0 %358
  %v361 = vadd.f32 %v357, %v359
  %362 = vrot.lane.b32.xlu0 %v344, 88
  %v363 = vpop.permute.xlu0 %362
  %v365 = vadd.f32 %v361, %v363
  %366 = vrot.lane.b32.xlu0 %v344, 80
  %v367 = vpop.permute.xlu0 %366
  %v369 = vadd.f32 %v365, %v367
  %370 = vrot.lane.b32.xlu0 %v344, 72
  %v371 = vpop.permute.xlu0 %370
  %v373 = vadd.f32 %v369, %v371
  %374 = vrot.lane.b32.xlu0 %v344, 64
  %v375 = vpop.permute.xlu0 %374
  %v377 = vadd.f32 %v373, %v375
  %378 = vrot.lane.b32.xlu0 %v344, 56
  %v379 = vpop.permute.xlu0 %378
  %v381 = vadd.f32 %v377, %v379
  %382 = vrot.lane.b32.xlu0 %v344, 48
  %v383 = vpop.permute.xlu0 %382
  %v385 = vadd.f32 %v381, %v383
  %386 = vrot.lane.b32.xlu0 %v344, 40
  %v387 = vpop.permute.xlu0 %386
  %v389 = vadd.f32 %v385, %v387
  %390 = vrot.lane.b32.xlu0 %v344, 32
  %v391 = vpop.permute.xlu0 %390
  %v393 = vadd.f32 %v389, %v391
  %394 = vrot.lane.b32.xlu0 %v344, 24
  %v395 = vpop.permute.xlu0 %394
  %v397 = vadd.f32 %v393, %v395
  %v398 = vmul.f32 %v397, 0.0025510204
  %400 = vrot.lane.b32.xlu0 %v398, 8
  %v401 = vpop.permute.xlu0 %400
  %403 = vrot.lane.b32.xlu0 %v398, 16
  %v404 = vpop.permute.xlu0 %403
  %406 = vrot.lane.b32.xlu0 %v398, 24
  %v407 = vpop.permute.xlu0 %406
  %409 = vrot.lane.b32.xlu0 %v398, 32
  %v410 = vpop.permute.xlu0 %409
  %412 = vrot.lane.b32.xlu0 %v398, 40
  %v413 = vpop.permute.xlu0 %412
  %415 = vrot.lane.b32.xlu0 %v398, 48
  %v416 = vpop.permute.xlu0 %415
  %418 = vrot.lane.b32.xlu0 %v398, 56
  %v419 = vpop.permute.xlu0 %418
  %421 = vrot.lane.b32.xlu0 %v398, 64
  %v422 = vpop.permute.xlu0 %421
  %424 = vrot.lane.b32.xlu0 %v398, 72
  %v425 = vpop.permute.xlu0 %424
  %427 = vrot.lane.b32.xlu0 %v398, 80
  %v428 = vpop.permute.xlu0 %427
  %430 = vrot.lane.b32.xlu0 %v398, 88
  %v431 = vpop.permute.xlu0 %430
  %433 = vrot.lane.b32.xlu0 %v398, 96
  %v434 = vpop.permute.xlu0 %433
  %436 = vrot.lane.b32.xlu0 %v398, 104
  %v437 = vpop.permute.xlu0 %436
  %v439 = vsel %vm76, %v398, %v401
  %v440 = vsel %vm78, %v439, %v404
  %v441 = vsel %vm80, %v440, %v407
  %v442 = vsel %vm82, %v441, %v410
  %v443 = vsel %vm84, %v442, %v413
  %v444 = vsel %vm86, %v443, %v416
  %v445 = vsel %vm88, %v444, %v419
  %v446 = vsel %vm90, %v445, %v422
  %v447 = vsel %vm92, %v446, %v425
  %v448 = vsel %vm94, %v447, %v428
  %v449 = vsel %vm96, %v448, %v431
  %v450 = vsel %vm98, %v449, %v434
  %v451 = vsel %vm100, %v450, %v437
  %v452 = vperm.slane %v451, 0
  %v453 = vsub.f32 %v224, %v452
  %v454 = vsub.f32 %v225, %v452
  %v455 = vsub.f32 %v320, %v452
  %v456 = vsub.f32 %v321, %v452
  %v457 = vmul.f32 %v453, %v453
  %v458 = vmul.f32 %v454, %v454
  %v459 = vsel %vm324, %v457, 0.0
  %v460 = vsel %vm326, %v458, 0.0
  %v461 = vadd.f32 %v459, %v460
  %v462 = vrot.slane %v461, 4
  %v463 = vadd.f32 %v461, %v462
  %v464 = vrot.slane %v463, 2
  %v465 = vadd.f32 %v463, %v464
  %v466 = vrot.slane %v465, 1
  %v467 = vadd.f32 %v465, %v466
  %v468 = vmul.f32 %v455, %v455
  %v469 = vmul.f32 %v456, %v456
  %v470 = vsel %vm324, %v468, 0.0
  %v471 = vsel %vm326, %v469, 0.0
  %v472 = vadd.f32 %v470, %v471
  %v473 = vrot.slane %v472, 4
  %v474 = vadd.f32 %v472, %v473
  %v475 = vrot.slane %v474, 2
  %v476 = vadd.f32 %v474, %v475
  %v477 = vrot.slane %v476, 1
  %v478 = vadd.f32 %v476, %v477
  %v479 = vadd.f32 %v467, %v478
  %481 = vrot.lane.b32.xlu0 %v479, 120
  %v482 = vpop.permute.xlu0 %481
  %v484 = vadd.f32 %v479, %v482
  %485 = vrot.lane.b32.xlu0 %v479, 112
  %v486 = vpop.permute.xlu0 %485
  %v488 = vadd.f32 %v484, %v486
  %489 = vrot.lane.b32.xlu0 %v479, 104
  %v490 = vpop.permute.xlu0 %489
  %v492 = vadd.f32 %v488, %v490
  %493 = vrot.lane.b32.xlu0 %v479, 96
  %v494 = vpop.permute.xlu0 %493
  %v496 = vadd.f32 %v492, %v494
  %497 = vrot.lane.b32.xlu0 %v479, 88
  %v498 = vpop.permute.xlu0 %497
  %v500 = vadd.f32 %v496, %v498
  %501 = vrot.lane.b32.xlu0 %v479, 80
  %v502 = vpop.permute.xlu0 %501
  %v504 = vadd.f32 %v500, %v502
  %505 = vrot.lane.b32.xlu0 %v479, 72
  %v506 = vpop.permute.xlu0 %505
  %v508 = vadd.f32 %v504, %v506
  %509 = vrot.lane.b32.xlu0 %v479, 64
  %v510 = vpop.permute.xlu0 %509
  %v512 = vadd.f32 %v508, %v510
  %513 = vrot.lane.b32.xlu0 %v479, 56
  %v514 = vpop.permute.xlu0 %513
  %v516 = vadd.f32 %v512, %v514
  %517 = vrot.lane.b32.xlu0 %v479, 48
  %v518 = vpop.permute.xlu0 %517
  %v520 = vadd.f32 %v516, %v518
  %521 = vrot.lane.b32.xlu0 %v479, 40
  %v522 = vpop.permute.xlu0 %521
  %v524 = vadd.f32 %v520, %v522
  %525 = vrot.lane.b32.xlu0 %v479, 32
  %v526 = vpop.permute.xlu0 %525
  %v528 = vadd.f32 %v524, %v526
  %529 = vrot.lane.b32.xlu0 %v479, 24
  %v530 = vpop.permute.xlu0 %529
  %v532 = vadd.f32 %v528, %v530
  %v533 = vmul.f32 %v532, 0.0025510204
  %v534 = vadd.f32 %v533, 1e-05
  %v535 = vrsqrt.pop %v534
  %v536 = vmul.f32 %v535, %v534
  %v537 = vmul.f32 %v536, %v535
  %v538 = vmul.f32 0.5, %v537
  %v539 = vsub.f32 1.5, %v538
  %v540 = vmul.f32 %v535, %v539
  %vm541 = vweird.f32 %v534
  %vm542 = vweird.f32 %v535
  %vm543 = vmor %vm541, %vm542
  %v544 = vsel %vm543, %v535, %v540
  %v545 = vmul.f32 %v322, %v544
  %v547 = vperm.slane %v545, 0
  %548 = vrot.lane.b32.xlu0 %v547, 8
  %v549 = vpop.permute.xlu0 %548
  %551 = vrot.lane.b32.xlu0 %v547, 16
  %v552 = vpop.permute.xlu0 %551
  %554 = vrot.lane.b32.xlu0 %v547, 24
  %v555 = vpop.permute.xlu0 %554
  %557 = vrot.lane.b32.xlu0 %v547, 32
  %v558 = vpop.permute.xlu0 %557
  %560 = vrot.lane.b32.xlu0 %v547, 40
  %v561 = vpop.permute.xlu0 %560
  %563 = vrot.lane.b32.xlu0 %v547, 48
  %v564 = vpop.permute.xlu0 %563
  %566 = vrot.lane.b32.xlu0 %v547, 56
  %v567 = vpop.permute.xlu0 %566
  %569 = vrot.lane.b32.xlu0 %v547, 64
  %v570 = vpop.permute.xlu0 %569
  %572 = vrot.lane.b32.xlu0 %v547, 72
  %v573 = vpop.permute.xlu0 %572
  %575 = vrot.lane.b32.xlu0 %v547, 80
  %v576 = vpop.permute.xlu0 %575
  %578 = vrot.lane.b32.xlu0 %v547, 88
  %v579 = vpop.permute.xlu0 %578
  %581 = vrot.lane.b32.xlu0 %v547, 96
  %v582 = vpop.permute.xlu0 %581
  %584 = vrot.lane.b32.xlu0 %v547, 104
  %v585 = vpop.permute.xlu0 %584
  %v587 = vsel %vm76, %v545, %v549
  %v588 = vsel %vm78, %v587, %v552
  %v589 = vsel %vm80, %v588, %v555
  %v590 = vsel %vm82, %v589, %v558
  %v591 = vsel %vm84, %v590, %v561
  %v592 = vsel %vm86, %v591, %v564
  %v593 = vsel %vm88, %v592, %v567
  %v594 = vsel %vm90, %v593, %v570
  %v595 = vsel %vm92, %v594, %v573
  %v596 = vsel %vm94, %v595, %v576
  %v597 = vsel %vm96, %v596, %v579
  %v598 = vsel %vm98, %v597, %v582
  %v599 = vsel %vm100, %v598, %v585
  %v601 = vperm.slane %v323, 0
  %602 = vrot.lane.b32.xlu0 %v601, 8
  %v603 = vpop.permute.xlu0 %602
  %605 = vrot.lane.b32.xlu0 %v601, 16
  %v606 = vpop.permute.xlu0 %605
  %608 = vrot.lane.b32.xlu0 %v601, 24
  %v609 = vpop.permute.xlu0 %608
  %611 = vrot.lane.b32.xlu0 %v601, 32
  %v612 = vpop.permute.xlu0 %611
  %614 = vrot.lane.b32.xlu0 %v601, 40
  %v615 = vpop.permute.xlu0 %614
  %617 = vrot.lane.b32.xlu0 %v601, 48
  %v618 = vpop.permute.xlu0 %617
  %620 = vrot.lane.b32.xlu0 %v601, 56
  %v621 = vpop.permute.xlu0 %620
  %623 = vrot.lane.b32.xlu0 %v601, 64
  %v624 = vpop.permute.xlu0 %623
  %626 = vrot.lane.b32.xlu0 %v601, 72
  %v627 = vpop.permute.xlu0 %626
  %629 = vrot.lane.b32.xlu0 %v601, 80
  %v630 = vpop.permute.xlu0 %629
  %632 = vrot.lane.b32.xlu0 %v601, 88
  %v633 = vpop.permute.xlu0 %632
  %635 = vrot.lane.b32.xlu0 %v601, 96
  %v636 = vpop.permute.xlu0 %635
  %638 = vrot.lane.b32.xlu0 %v601, 104
  %v639 = vpop.permute.xlu0 %638
  %v641 = vsel %vm76, %v323, %v603
  %v642 = vsel %vm78, %v641, %v606
  %v643 = vsel %vm80, %v642, %v609
  %v644 = vsel %vm82, %v643, %v612
  %v645 = vsel %vm84, %v644, %v615
  %v646 = vsel %vm86, %v645, %v618
  %v647 = vsel %vm88, %v646, %v621
  %v648 = vsel %vm90, %v647, %v624
  %v649 = vsel %vm92, %v648, %v627
  %v650 = vsel %vm94, %v649, %v630
  %v651 = vsel %vm96, %v650, %v633
  %v652 = vsel %vm98, %v651, %v636
  %v653 = vsel %vm100, %v652, %v639
  %v654 = vperm.slane %v599, 0
  %v655 = vmul.f32 %v453, %v654
  %v656 = vmul.f32 %v454, %v654
  %v657 = vperm.slane %v653, 0
  %v658 = vadd.f32 %v655, %v657
  %v659 = vadd.f32 %v656, %v657
  %v660 = vmax.f32 %v658, 0.0
  %v661 = vmax.f32 %v659, 0.0
  %v662 = vmul.f32 %v455, %v654
  %v663 = vmul.f32 %v456, %v654
  %v664 = vadd.f32 %v662, %v657
  %v665 = vadd.f32 %v663, %v657
  %v666 = vmax.f32 %v664, 0.0
  %v667 = vmax.f32 %v665, 0.0
  %v668 = vld [vmem:[%s6] sm:$0x1]
  %v670 = vperm.slane %v668, 0
  %671 = vrot.lane.b32.xlu0 %v670, 8
  %v672 = vpop.permute.xlu0 %671
  %674 = vrot.lane.b32.xlu0 %v670, 16
  %v675 = vpop.permute.xlu0 %674
  %677 = vrot.lane.b32.xlu0 %v670, 24
  %v678 = vpop.permute.xlu0 %677
  %680 = vrot.lane.b32.xlu0 %v670, 32
  %v681 = vpop.permute.xlu0 %680
  %683 = vrot.lane.b32.xlu0 %v670, 40
  %v684 = vpop.permute.xlu0 %683
  %686 = vrot.lane.b32.xlu0 %v670, 48
  %v687 = vpop.permute.xlu0 %686
  %689 = vrot.lane.b32.xlu0 %v670, 56
  %v690 = vpop.permute.xlu0 %689
  %692 = vrot.lane.b32.xlu0 %v670, 64
  %v693 = vpop.permute.xlu0 %692
  %695 = vrot.lane.b32.xlu0 %v670, 72
  %v696 = vpop.permute.xlu0 %695
  %698 = vrot.lane.b32.xlu0 %v670, 80
  %v699 = vpop.permute.xlu0 %698
  %701 = vrot.lane.b32.xlu0 %v670, 88
  %v702 = vpop.permute.xlu0 %701
  %v704 = vsel %vm76, %v668, %v672
  %v705 = vsel %vm78, %v704, %v675
  %v706 = vsel %vm80, %v705, %v678
  %v707 = vsel %vm82, %v706, %v681
  %v708 = vsel %vm84, %v707, %v684
  %v709 = vsel %vm86, %v708, %v687
  %v710 = vsel %vm88, %v709, %v690
  %v711 = vsel %vm90, %v710, %v693
  %v712 = vsel %vm92, %v711, %v696
  %v713 = vsel %vm94, %v712, %v699
  %v714 = vsel %vm96, %v713, %v702
  %v715 = vld [vmem:[%s5] sm:$0xff]
  %v716 = vld [vmem:[%s5 + $0x8] sm:$0xff]
  %v717 = vld [vmem:[%s5 + $0x10] sm:$0xff]
  %v718 = vld [vmem:[%s5 + $0x18] sm:$0xff]
  %v719 = vld [vmem:[%s5 + $0x20] sm:$0xff]
  %v720 = vld [vmem:[%s5 + $0x28] sm:$0xff]
  %v721 = vld [vmem:[%s5 + $0x30] sm:$0xff]
  %v722 = vld [vmem:[%s5 + $0x38] sm:$0xff]
  %v723 = vld [vmem:[%s5 + $0x40] sm:$0xff]
  %v724 = vld [vmem:[%s5 + $0x48] sm:$0xff]
  %v725 = vld [vmem:[%s5 + $0x50] sm:$0xff]
  %v726 = vld [vmem:[%s5 + $0x58] sm:$0xff]
  %v727 = vld [vmem:[%s5 + $0x60] sm:$0xff]
  %v728 = vld [vmem:[%s5 + $0x68] sm:$0xff]
  %s729 = scalar_lea.vmem %s5, 112
  %v730 = vld [vmem:[%s729] sm:$0xff]
  %v731 = vld [vmem:[%s729 + $0x8] sm:$0xff]
  %v732 = vld [vmem:[%s729 + $0x10] sm:$0xff]
  %v733 = vld [vmem:[%s729 + $0x18] sm:$0xff]
  %v734 = vld [vmem:[%s729 + $0x20] sm:$0xff]
  %v735 = vld [vmem:[%s729 + $0x28] sm:$0xff]
  %v736 = vld [vmem:[%s729 + $0x30] sm:$0xff]
  %v737 = vld [vmem:[%s729 + $0x38] sm:$0xff]
  %v738 = vld [vmem:[%s729 + $0x40] sm:$0xff]
  %v739 = vld [vmem:[%s729 + $0x48] sm:$0xff]
  %v740 = vld [vmem:[%s729 + $0x50] sm:$0xff]
  %v741 = vld [vmem:[%s729 + $0x58] sm:$0xff]
  %v742 = vld [vmem:[%s729 + $0x60] sm:$0xff]
  %v743 = vld [vmem:[%s729 + $0x68] sm:$0xff]
  %v746 = vrot.slane %v660, 1
  %v747 = vrot.slane %v661, 1
  %v748 = vsel %vm123, %v746, %v747
  %v749 = vsel %vm324, %v748, 0
  %v751 = vsel %vm324, %v747, 0
  %753 = vmatpush.msra.mxu0 0.0
  %754 = vmatpush.msra.mxu0 0.0
  %755 = vmatpush.msra.mxu0 %v743
  %756 = vmatpush.msra.mxu0 %v742
  %757 = vmatpush.msra.mxu0 %v741
  %758 = vmatpush.msra.mxu0 %v740
  %759 = vmatpush.msra.mxu0 %v739
  %760 = vmatpush.msra.mxu0 %v738
  %761 = vmatpush.msra.mxu0 %v737
  %762 = vmatpush.msra.mxu0 %v736
  %763 = vmatpush.msra.mxu0 %v735
  %764 = vmatpush.msra.mxu0 %v734
  %765 = vmatpush.msra.mxu0 %v733
  %766 = vmatpush.msra.mxu0 %v732
  %767 = vmatpush.msra.mxu0 %v731
  %768 = vmatpush.msra.mxu0 %v730
  %769 = vmatmul.f32.gmra.mxu0 %v749
  %v770 = vpop.f32.mrf.mxu0
  %v771 = vadd.f32 0.0, %v770
  %772 = vmatmul.f32.gmra.mxu0 %v751
  %v773 = vpop.f32.mrf.mxu0
  %v774 = vadd.f32 0.0, %v773
  %775 = vdwg.mxu0
  %v776 = vsel %vm324, %v660, 0
  %v778 = vsel %vm324, %v661, 0
  %780 = vmatpush.msra.mxu0 0.0
  %781 = vmatpush.msra.mxu0 0.0
  %782 = vmatpush.msra.mxu0 %v728
  %783 = vmatpush.msra.mxu0 %v727
  %784 = vmatpush.msra.mxu0 %v726
  %785 = vmatpush.msra.mxu0 %v725
  %786 = vmatpush.msra.mxu0 %v724
  %787 = vmatpush.msra.mxu0 %v723
  %788 = vmatpush.msra.mxu0 %v722
  %789 = vmatpush.msra.mxu0 %v721
  %790 = vmatpush.msra.mxu0 %v720
  %791 = vmatpush.msra.mxu0 %v719
  %792 = vmatpush.msra.mxu0 %v718
  %793 = vmatpush.msra.mxu0 %v717
  %794 = vmatpush.msra.mxu0 %v716
  %795 = vmatpush.msra.mxu0 %v715
  %796 = vmatmul.f32.gmra.mxu0 %v776
  %v797 = vpop.f32.mrf.mxu0
  %v798 = vadd.f32 %v771, %v797
  %799 = vmatmul.f32.gmra.mxu0 %v778
  %v800 = vpop.f32.mrf.mxu0
  %v801 = vadd.f32 %v774, %v800
  %802 = vdwg.mxu0
  %s803 = scalar_lea.vmem %s5, 224
  %v804 = vld [vmem:[%s803] sm:$0xff]
  %v805 = vld [vmem:[%s803 + $0x8] sm:$0xff]
  %v806 = vld [vmem:[%s803 + $0x10] sm:$0xff]
  %v807 = vld [vmem:[%s803 + $0x18] sm:$0xff]
  %v808 = vld [vmem:[%s803 + $0x20] sm:$0xff]
  %v809 = vld [vmem:[%s803 + $0x28] sm:$0xff]
  %v810 = vld [vmem:[%s803 + $0x30] sm:$0xff]
  %v811 = vld [vmem:[%s803 + $0x38] sm:$0xff]
  %v812 = vld [vmem:[%s803 + $0x40] sm:$0xff]
  %v813 = vld [vmem:[%s803 + $0x48] sm:$0xff]
  %v814 = vld [vmem:[%s803 + $0x50] sm:$0xff]
  %v815 = vld [vmem:[%s803 + $0x58] sm:$0xff]
  %v816 = vld [vmem:[%s803 + $0x60] sm:$0xff]
  %v817 = vld [vmem:[%s803 + $0x68] sm:$0xff]
  %v818 = vrot.slane %v660, 2
  %v819 = vrot.slane %v661, 2
  %v820 = vsel %vm190, %v818, %v819
  %v821 = vsel %vm324, %v820, 0
  %v823 = vsel %vm324, %v819, 0
  %825 = vmatpush.msra.mxu0 0.0
  %826 = vmatpush.msra.mxu0 0.0
  %827 = vmatpush.msra.mxu0 %v817
  %828 = vmatpush.msra.mxu0 %v816
  %829 = vmatpush.msra.mxu0 %v815
  %830 = vmatpush.msra.mxu0 %v814
  %831 = vmatpush.msra.mxu0 %v813
  %832 = vmatpush.msra.mxu0 %v812
  %833 = vmatpush.msra.mxu0 %v811
  %834 = vmatpush.msra.mxu0 %v810
  %835 = vmatpush.msra.mxu0 %v809
  %836 = vmatpush.msra.mxu0 %v808
  %837 = vmatpush.msra.mxu0 %v807
  %838 = vmatpush.msra.mxu0 %v806
  %839 = vmatpush.msra.mxu0 %v805
  %840 = vmatpush.msra.mxu0 %v804
  %841 = vmatmul.f32.gmra.mxu0 %v821
  %v842 = vpop.f32.mrf.mxu0
  %v843 = vadd.f32 0.0, %v842
  %844 = vmatmul.f32.gmra.mxu0 %v823
  %v845 = vpop.f32.mrf.mxu0
  %v846 = vadd.f32 0.0, %v845
  %847 = vdwg.mxu0
  %v848 = vadd.f32 %v798, %v843
  %v849 = vadd.f32 %v801, %v846
  %v850 = vperm.slane %v714, 0
  %v851 = vadd.f32 %v848, %v850
  %v852 = vadd.f32 %v849, %v850
  %v855 = vrot.slane %v666, 1
  %v856 = vrot.slane %v667, 1
  %v857 = vsel %vm123, %v855, %v856
  %v858 = vsel %vm324, %v857, 0
  %v860 = vsel %vm324, %v856, 0
  %862 = vmatpush.msra.mxu0 0.0
  %863 = vmatpush.msra.mxu0 0.0
  %864 = vmatpush.msra.mxu0 %v743
  %865 = vmatpush.msra.mxu0 %v742
  %866 = vmatpush.msra.mxu0 %v741
  %867 = vmatpush.msra.mxu0 %v740
  %868 = vmatpush.msra.mxu0 %v739
  %869 = vmatpush.msra.mxu0 %v738
  %870 = vmatpush.msra.mxu0 %v737
  %871 = vmatpush.msra.mxu0 %v736
  %872 = vmatpush.msra.mxu0 %v735
  %873 = vmatpush.msra.mxu0 %v734
  %874 = vmatpush.msra.mxu0 %v733
  %875 = vmatpush.msra.mxu0 %v732
  %876 = vmatpush.msra.mxu0 %v731
  %877 = vmatpush.msra.mxu0 %v730
  %878 = vmatmul.f32.gmra.mxu0 %v858
  %v879 = vpop.f32.mrf.mxu0
  %v880 = vadd.f32 0.0, %v879
  %881 = vmatmul.f32.gmra.mxu0 %v860
  %v882 = vpop.f32.mrf.mxu0
  %v883 = vadd.f32 0.0, %v882
  %884 = vdwg.mxu0
  %v885 = vsel %vm324, %v666, 0
  %v887 = vsel %vm324, %v667, 0
  %889 = vmatpush.msra.mxu0 0.0
  %890 = vmatpush.msra.mxu0 0.0
  %891 = vmatpush.msra.mxu0 %v728
  %892 = vmatpush.msra.mxu0 %v727
  %893 = vmatpush.msra.mxu0 %v726
  %894 = vmatpush.msra.mxu0 %v725
  %895 = vmatpush.msra.mxu0 %v724
  %896 = vmatpush.msra.mxu0 %v723
  %897 = vmatpush.msra.mxu0 %v722
  %898 = vmatpush.msra.mxu0 %v721
  %899 = vmatpush.msra.mxu0 %v720
  %900 = vmatpush.msra.mxu0 %v719
  %901 = vmatpush.msra.mxu0 %v718
  %902 = vmatpush.msra.mxu0 %v717
  %903 = vmatpush.msra.mxu0 %v716
  %904 = vmatpush.msra.mxu0 %v715
  %905 = vmatmul.f32.gmra.mxu0 %v885
  %v906 = vpop.f32.mrf.mxu0
  %v907 = vadd.f32 %v880, %v906
  %908 = vmatmul.f32.gmra.mxu0 %v887
  %v909 = vpop.f32.mrf.mxu0
  %v910 = vadd.f32 %v883, %v909
  %911 = vdwg.mxu0
  %v912 = vrot.slane %v666, 2
  %v913 = vrot.slane %v667, 2
  %v914 = vsel %vm190, %v912, %v913
  %v915 = vsel %vm324, %v914, 0
  %v917 = vsel %vm324, %v913, 0
  %919 = vmatpush.msra.mxu0 0.0
  %920 = vmatpush.msra.mxu0 0.0
  %921 = vmatpush.msra.mxu0 %v817
  %922 = vmatpush.msra.mxu0 %v816
  %923 = vmatpush.msra.mxu0 %v815
  %924 = vmatpush.msra.mxu0 %v814
  %925 = vmatpush.msra.mxu0 %v813
  %926 = vmatpush.msra.mxu0 %v812
  %927 = vmatpush.msra.mxu0 %v811
  %928 = vmatpush.msra.mxu0 %v810
  %929 = vmatpush.msra.mxu0 %v809
  %930 = vmatpush.msra.mxu0 %v808
  %931 = vmatpush.msra.mxu0 %v807
  %932 = vmatpush.msra.mxu0 %v806
  %933 = vmatpush.msra.mxu0 %v805
  %934 = vmatpush.msra.mxu0 %v804
  %935 = vmatmul.f32.gmra.mxu0 %v915
  %v936 = vpop.f32.mrf.mxu0
  %v937 = vadd.f32 0.0, %v936
  %938 = vmatmul.f32.gmra.mxu0 %v917
  %v939 = vpop.f32.mrf.mxu0
  %v940 = vadd.f32 0.0, %v939
  %941 = vdwg.mxu0
  %v942 = vadd.f32 %v907, %v937
  %v943 = vadd.f32 %v910, %v940
  %v944 = vadd.f32 %v942, %v850
  %v945 = vadd.f32 %v943, %v850
  %v946 = vld [vmem:[%s7] sm:$0x1]
  %v947 = vld [vmem:[%s8] sm:$0x1]
  %v948 = vsel %vm98, %v851, 0.0
  %vm949 = vcmask 781312
  %v950 = vsel %vm949, %v852, 0.0
  %v951 = vadd.f32 %v948, %v950
  %v952 = vrot.slane %v951, 4
  %v953 = vadd.f32 %v951, %v952
  %v954 = vrot.slane %v953, 2
  %v955 = vadd.f32 %v953, %v954
  %v956 = vrot.slane %v955, 1
  %v957 = vadd.f32 %v955, %v956
  %v958 = vsel %vm98, %v944, 0.0
  %v959 = vsel %vm949, %v945, 0.0
  %v960 = vadd.f32 %v958, %v959
  %v961 = vrot.slane %v960, 4
  %v962 = vadd.f32 %v960, %v961
  %v963 = vrot.slane %v962, 2
  %v964 = vadd.f32 %v962, %v963
  %v965 = vrot.slane %v964, 1
  %v966 = vadd.f32 %v964, %v965
  %v967 = vadd.f32 %v957, %v966
  %969 = vrot.lane.b32.xlu0 %v967, 120
  %v970 = vpop.permute.xlu0 %969
  %v972 = vadd.f32 %v967, %v970
  %973 = vrot.lane.b32.xlu0 %v967, 112
  %v974 = vpop.permute.xlu0 %973
  %v976 = vadd.f32 %v972, %v974
  %977 = vrot.lane.b32.xlu0 %v967, 104
  %v978 = vpop.permute.xlu0 %977
  %v980 = vadd.f32 %v976, %v978
  %981 = vrot.lane.b32.xlu0 %v967, 96
  %v982 = vpop.permute.xlu0 %981
  %v984 = vadd.f32 %v980, %v982
  %985 = vrot.lane.b32.xlu0 %v967, 88
  %v986 = vpop.permute.xlu0 %985
  %v988 = vadd.f32 %v984, %v986
  %989 = vrot.lane.b32.xlu0 %v967, 80
  %v990 = vpop.permute.xlu0 %989
  %v992 = vadd.f32 %v988, %v990
  %993 = vrot.lane.b32.xlu0 %v967, 72
  %v994 = vpop.permute.xlu0 %993
  %v996 = vadd.f32 %v992, %v994
  %997 = vrot.lane.b32.xlu0 %v967, 64
  %v998 = vpop.permute.xlu0 %997
  %v1000 = vadd.f32 %v996, %v998
  %1001 = vrot.lane.b32.xlu0 %v967, 56
  %v1002 = vpop.permute.xlu0 %1001
  %v1004 = vadd.f32 %v1000, %v1002
  %1005 = vrot.lane.b32.xlu0 %v967, 48
  %v1006 = vpop.permute.xlu0 %1005
  %v1008 = vadd.f32 %v1004, %v1006
  %1009 = vrot.lane.b32.xlu0 %v967, 40
  %v1010 = vpop.permute.xlu0 %1009
  %v1012 = vadd.f32 %v1008, %v1010
  %v1013 = vmul.f32 %v1012, 0.0034722222
  %1015 = vrot.lane.b32.xlu0 %v1013, 8
  %v1016 = vpop.permute.xlu0 %1015
  %1018 = vrot.lane.b32.xlu0 %v1013, 16
  %v1019 = vpop.permute.xlu0 %1018
  %1021 = vrot.lane.b32.xlu0 %v1013, 24
  %v1022 = vpop.permute.xlu0 %1021
  %1024 = vrot.lane.b32.xlu0 %v1013, 32
  %v1025 = vpop.permute.xlu0 %1024
  %1027 = vrot.lane.b32.xlu0 %v1013, 40
  %v1028 = vpop.permute.xlu0 %1027
  %1030 = vrot.lane.b32.xlu0 %v1013, 48
  %v1031 = vpop.permute.xlu0 %1030
  %1033 = vrot.lane.b32.xlu0 %v1013, 56
  %v1034 = vpop.permute.xlu0 %1033
  %1036 = vrot.lane.b32.xlu0 %v1013, 64
  %v1037 = vpop.permute.xlu0 %1036
  %1039 = vrot.lane.b32.xlu0 %v1013, 72
  %v1040 = vpop.permute.xlu0 %1039
  %1042 = vrot.lane.b32.xlu0 %v1013, 80
  %v1043 = vpop.permute.xlu0 %1042
  %1045 = vrot.lane.b32.xlu0 %v1013, 88
  %v1046 = vpop.permute.xlu0 %1045
  %v1048 = vsel %vm76, %v1013, %v1016
  %v1049 = vsel %vm78, %v1048, %v1019
  %v1050 = vsel %vm80, %v1049, %v1022
  %v1051 = vsel %vm82, %v1050, %v1025
  %v1052 = vsel %vm84, %v1051, %v1028
  %v1053 = vsel %vm86, %v1052, %v1031
  %v1054 = vsel %vm88, %v1053, %v1034
  %v1055 = vsel %vm90, %v1054, %v1037
  %v1056 = vsel %vm92, %v1055, %v1040
  %v1057 = vsel %vm94, %v1056, %v1043
  %v1058 = vsel %vm96, %v1057, %v1046
  %v1059 = vperm.slane %v1058, 0
  %v1060 = vsub.f32 %v851, %v1059
  %v1061 = vsub.f32 %v852, %v1059
  %v1062 = vsub.f32 %v944, %v1059
  %v1063 = vsub.f32 %v945, %v1059
  %v1064 = vmul.f32 %v1060, %v1060
  %v1065 = vmul.f32 %v1061, %v1061
  %v1066 = vsel %vm98, %v1064, 0.0
  %v1067 = vsel %vm949, %v1065, 0.0
  %v1068 = vadd.f32 %v1066, %v1067
  %v1069 = vrot.slane %v1068, 4
  %v1070 = vadd.f32 %v1068, %v1069
  %v1071 = vrot.slane %v1070, 2
  %v1072 = vadd.f32 %v1070, %v1071
  %v1073 = vrot.slane %v1072, 1
  %v1074 = vadd.f32 %v1072, %v1073
  %v1075 = vmul.f32 %v1062, %v1062
  %v1076 = vmul.f32 %v1063, %v1063
  %v1077 = vsel %vm98, %v1075, 0.0
  %v1078 = vsel %vm949, %v1076, 0.0
  %v1079 = vadd.f32 %v1077, %v1078
  %v1080 = vrot.slane %v1079, 4
  %v1081 = vadd.f32 %v1079, %v1080
  %v1082 = vrot.slane %v1081, 2
  %v1083 = vadd.f32 %v1081, %v1082
  %v1084 = vrot.slane %v1083, 1
  %v1085 = vadd.f32 %v1083, %v1084
  %v1086 = vadd.f32 %v1074, %v1085
  %1088 = vrot.lane.b32.xlu0 %v1086, 120
  %v1089 = vpop.permute.xlu0 %1088
  %v1091 = vadd.f32 %v1086, %v1089
  %1092 = vrot.lane.b32.xlu0 %v1086, 112
  %v1093 = vpop.permute.xlu0 %1092
  %v1095 = vadd.f32 %v1091, %v1093
  %1096 = vrot.lane.b32.xlu0 %v1086, 104
  %v1097 = vpop.permute.xlu0 %1096
  %v1099 = vadd.f32 %v1095, %v1097
  %1100 = vrot.lane.b32.xlu0 %v1086, 96
  %v1101 = vpop.permute.xlu0 %1100
  %v1103 = vadd.f32 %v1099, %v1101
  %1104 = vrot.lane.b32.xlu0 %v1086, 88
  %v1105 = vpop.permute.xlu0 %1104
  %v1107 = vadd.f32 %v1103, %v1105
  %1108 = vrot.lane.b32.xlu0 %v1086, 80
  %v1109 = vpop.permute.xlu0 %1108
  %v1111 = vadd.f32 %v1107, %v1109
  %1112 = vrot.lane.b32.xlu0 %v1086, 72
  %v1113 = vpop.permute.xlu0 %1112
  %v1115 = vadd.f32 %v1111, %v1113
  %1116 = vrot.lane.b32.xlu0 %v1086, 64
  %v1117 = vpop.permute.xlu0 %1116
  %v1119 = vadd.f32 %v1115, %v1117
  %1120 = vrot.lane.b32.xlu0 %v1086, 56
  %v1121 = vpop.permute.xlu0 %1120
  %v1123 = vadd.f32 %v1119, %v1121
  %1124 = vrot.lane.b32.xlu0 %v1086, 48
  %v1125 = vpop.permute.xlu0 %1124
  %v1127 = vadd.f32 %v1123, %v1125
  %1128 = vrot.lane.b32.xlu0 %v1086, 40
  %v1129 = vpop.permute.xlu0 %1128
  %v1131 = vadd.f32 %v1127, %v1129
  %v1132 = vmul.f32 %v1131, 0.0034722222
  %v1133 = vadd.f32 %v1132, 1e-05
  %v1134 = vrsqrt.pop %v1133
  %v1135 = vmul.f32 %v1134, %v1133
  %v1136 = vmul.f32 %v1135, %v1134
  %v1137 = vmul.f32 0.5, %v1136
  %v1138 = vsub.f32 1.5, %v1137
  %v1139 = vmul.f32 %v1134, %v1138
  %vm1140 = vweird.f32 %v1133
  %vm1141 = vweird.f32 %v1134
  %vm1142 = vmor %vm1140, %vm1141
  %v1143 = vsel %vm1142, %v1134, %v1139
  %v1144 = vmul.f32 %v946, %v1143
  %v1146 = vperm.slane %v1144, 0
  %1147 = vrot.lane.b32.xlu0 %v1146, 8
  %v1148 = vpop.permute.xlu0 %1147
  %1150 = vrot.lane.b32.xlu0 %v1146, 16
  %v1151 = vpop.permute.xlu0 %1150
  %1153 = vrot.lane.b32.xlu0 %v1146, 24
  %v1154 = vpop.permute.xlu0 %1153
  %1156 = vrot.lane.b32.xlu0 %v1146, 32
  %v1157 = vpop.permute.xlu0 %1156
  %1159 = vrot.lane.b32.xlu0 %v1146, 40
  %v1160 = vpop.permute.xlu0 %1159
  %1162 = vrot.lane.b32.xlu0 %v1146, 48
  %v1163 = vpop.permute.xlu0 %1162
  %1165 = vrot.lane.b32.xlu0 %v1146, 56
  %v1166 = vpop.permute.xlu0 %1165
  %1168 = vrot.lane.b32.xlu0 %v1146, 64
  %v1169 = vpop.permute.xlu0 %1168
  %1171 = vrot.lane.b32.xlu0 %v1146, 72
  %v1172 = vpop.permute.xlu0 %1171
  %1174 = vrot.lane.b32.xlu0 %v1146, 80
  %v1175 = vpop.permute.xlu0 %1174
  %1177 = vrot.lane.b32.xlu0 %v1146, 88
  %v1178 = vpop.permute.xlu0 %1177
  %v1180 = vsel %vm76, %v1144, %v1148
  %v1181 = vsel %vm78, %v1180, %v1151
  %v1182 = vsel %vm80, %v1181, %v1154
  %v1183 = vsel %vm82, %v1182, %v1157
  %v1184 = vsel %vm84, %v1183, %v1160
  %v1185 = vsel %vm86, %v1184, %v1163
  %v1186 = vsel %vm88, %v1185, %v1166
  %v1187 = vsel %vm90, %v1186, %v1169
  %v1188 = vsel %vm92, %v1187, %v1172
  %v1189 = vsel %vm94, %v1188, %v1175
  %v1190 = vsel %vm96, %v1189, %v1178
  %v1192 = vperm.slane %v947, 0
  %1193 = vrot.lane.b32.xlu0 %v1192, 8
  %v1194 = vpop.permute.xlu0 %1193
  %1196 = vrot.lane.b32.xlu0 %v1192, 16
  %v1197 = vpop.permute.xlu0 %1196
  %1199 = vrot.lane.b32.xlu0 %v1192, 24
  %v1200 = vpop.permute.xlu0 %1199
  %1202 = vrot.lane.b32.xlu0 %v1192, 32
  %v1203 = vpop.permute.xlu0 %1202
  %1205 = vrot.lane.b32.xlu0 %v1192, 40
  %v1206 = vpop.permute.xlu0 %1205
  %1208 = vrot.lane.b32.xlu0 %v1192, 48
  %v1209 = vpop.permute.xlu0 %1208
  %1211 = vrot.lane.b32.xlu0 %v1192, 56
  %v1212 = vpop.permute.xlu0 %1211
  %1214 = vrot.lane.b32.xlu0 %v1192, 64
  %v1215 = vpop.permute.xlu0 %1214
  %1217 = vrot.lane.b32.xlu0 %v1192, 72
  %v1218 = vpop.permute.xlu0 %1217
  %1220 = vrot.lane.b32.xlu0 %v1192, 80
  %v1221 = vpop.permute.xlu0 %1220
  %1223 = vrot.lane.b32.xlu0 %v1192, 88
  %v1224 = vpop.permute.xlu0 %1223
  %v1226 = vsel %vm76, %v947, %v1194
  %v1227 = vsel %vm78, %v1226, %v1197
  %v1228 = vsel %vm80, %v1227, %v1200
  %v1229 = vsel %vm82, %v1228, %v1203
  %v1230 = vsel %vm84, %v1229, %v1206
  %v1231 = vsel %vm86, %v1230, %v1209
  %v1232 = vsel %vm88, %v1231, %v1212
  %v1233 = vsel %vm90, %v1232, %v1215
  %v1234 = vsel %vm92, %v1233, %v1218
  %v1235 = vsel %vm94, %v1234, %v1221
  %v1236 = vsel %vm96, %v1235, %v1224
  %v1237 = vperm.slane %v1190, 0
  %v1238 = vmul.f32 %v1060, %v1237
  %v1239 = vmul.f32 %v1061, %v1237
  %v1240 = vperm.slane %v1236, 0
  %v1241 = vadd.f32 %v1238, %v1240
  %v1242 = vadd.f32 %v1239, %v1240
  %v1243 = vmax.f32 %v1241, 0.0
  %v1244 = vmax.f32 %v1242, 0.0
  %v1245 = vmul.f32 %v1062, %v1237
  %v1246 = vmul.f32 %v1063, %v1237
  %v1247 = vadd.f32 %v1245, %v1240
  %v1248 = vadd.f32 %v1246, %v1240
  %v1249 = vmax.f32 %v1247, 0.0
  %v1250 = vmax.f32 %v1248, 0.0
  %1251 = vst.msk [vmem:[%s9] sm:$0xff] %vm98, %v1243
  %1252 = vst.msk [vmem:[%s9 + $0x8] sm:$0xf] %vm949, %v1244
  %1255 = vrot.lane.b32.xlu0 %v1243, 120
  %v1256 = vpop.permute.xlu0 %1255
  %1257 = vrot.lane.b32.xlu0 %v1244, 120
  %v1258 = vpop.permute.xlu0 %1257
  %v1261 = vmax.f32 %v1243, %v1256
  %v1262 = vmax.f32 %v1244, %v1258
  %1265 = vrot.lane.b32.xlu0 %v1261, 120
  %v1266 = vpop.permute.xlu0 %1265
  %1267 = vrot.lane.b32.xlu0 %v1262, 120
  %v1268 = vpop.permute.xlu0 %1267
  %1271 = vrot.lane.b32.xlu0 %v1261, 112
  %v1272 = vpop.permute.xlu0 %1271
  %1273 = vrot.lane.b32.xlu0 %v1262, 112
  %v1274 = vpop.permute.xlu0 %1273
  %1277 = vrot.lane.b32.xlu0 %v1261, 104
  %v1278 = vpop.permute.xlu0 %1277
  %1279 = vrot.lane.b32.xlu0 %v1262, 104
  %v1280 = vpop.permute.xlu0 %1279
  %1283 = vrot.lane.b32.xlu0 %v1261, 96
  %v1284 = vpop.permute.xlu0 %1283
  %1285 = vrot.lane.b32.xlu0 %v1262, 96
  %v1286 = vpop.permute.xlu0 %1285
  %1289 = vrot.lane.b32.xlu0 %v1261, 88
  %v1290 = vpop.permute.xlu0 %1289
  %1291 = vrot.lane.b32.xlu0 %v1262, 88
  %v1292 = vpop.permute.xlu0 %1291
  %v1295 = vsel %vm76, %v1261, %v1266
  %v1296 = vsel %vm76, %v1262, %v1268
  %v1297 = vsel %vm78, %v1295, %v1272
  %v1298 = vsel %vm78, %v1296, %v1274
  %v1299 = vsel %vm80, %v1297, %v1278
  %v1300 = vsel %vm80, %v1298, %v1280
  %v1301 = vsel %vm82, %v1299, %v1284
  %v1302 = vsel %vm82, %v1300, %v1286
  %v1303 = vsel %vm84, %v1301, %v1290
  %v1304 = vsel %vm84, %v1302, %v1292
  %v1306 = vrot.slane %v1303, 1
  %v1308 = vmax.f32 %v1303, %v1306
  %v1310 = vrot.slane %v1304, 1
  %v1312 = vmax.f32 %v1304, %v1310
  %v1314 = vrot.slane %v1308, 1
  %v1316 = vrot.slane %v1308, 2
  %v1318 = vrot.slane %v1308, 3
  %v1321 = vrot.slane %v1312, 4
  %v1323 = vrot.slane %v1312, 5
  %vm1325 = vcmask 1040384
  %v1326 = vsel %vm1325, %v1308, %v1314
  %vm1327 = vcmask 1041408
  %v1328 = vsel %vm1327, %v1326, %v1316
  %vm1329 = vcmask 1042432
  %v1330 = vsel %vm1329, %v1328, %v1318
  %vm1331 = vcmask 1043456
  %v1332 = vsel %vm1331, %v1330, %v1321
  %vm1333 = vcmask 1044480
  %v1334 = vsel %vm1333, %v1332, %v1323
  %vm1335 = vcmask 390144
  %1336 = vst.msk [vmem:[%s10] sm:$0x3f] %vm1335, %v1334
  %s1337 = scalar_lea.vmem %s9, 16
  %1338 = vst.msk [vmem:[%s1337] sm:$0xff] %vm98, %v1249
  %1339 = vst.msk [vmem:[%s1337 + $0x8] sm:$0xf] %vm949, %v1250
  %1342 = vrot.lane.b32.xlu0 %v1249, 120
  %v1343 = vpop.permute.xlu0 %1342
  %1344 = vrot.lane.b32.xlu0 %v1250, 120
  %v1345 = vpop.permute.xlu0 %1344
  %v1348 = vmax.f32 %v1249, %v1343
  %v1349 = vmax.f32 %v1250, %v1345
  %1352 = vrot.lane.b32.xlu0 %v1348, 120
  %v1353 = vpop.permute.xlu0 %1352
  %1354 = vrot.lane.b32.xlu0 %v1349, 120
  %v1355 = vpop.permute.xlu0 %1354
  %1358 = vrot.lane.b32.xlu0 %v1348, 112
  %v1359 = vpop.permute.xlu0 %1358
  %1360 = vrot.lane.b32.xlu0 %v1349, 112
  %v1361 = vpop.permute.xlu0 %1360
  %1364 = vrot.lane.b32.xlu0 %v1348, 104
  %v1365 = vpop.permute.xlu0 %1364
  %1366 = vrot.lane.b32.xlu0 %v1349, 104
  %v1367 = vpop.permute.xlu0 %1366
  %1370 = vrot.lane.b32.xlu0 %v1348, 96
  %v1371 = vpop.permute.xlu0 %1370
  %1372 = vrot.lane.b32.xlu0 %v1349, 96
  %v1373 = vpop.permute.xlu0 %1372
  %1376 = vrot.lane.b32.xlu0 %v1348, 88
  %v1377 = vpop.permute.xlu0 %1376
  %1378 = vrot.lane.b32.xlu0 %v1349, 88
  %v1379 = vpop.permute.xlu0 %1378
  %v1382 = vsel %vm76, %v1348, %v1353
  %v1383 = vsel %vm76, %v1349, %v1355
  %v1384 = vsel %vm78, %v1382, %v1359
  %v1385 = vsel %vm78, %v1383, %v1361
  %v1386 = vsel %vm80, %v1384, %v1365
  %v1387 = vsel %vm80, %v1385, %v1367
  %v1388 = vsel %vm82, %v1386, %v1371
  %v1389 = vsel %vm82, %v1387, %v1373
  %v1390 = vsel %vm84, %v1388, %v1377
  %v1391 = vsel %vm84, %v1389, %v1379
  %v1393 = vrot.slane %v1390, 1
  %v1395 = vmax.f32 %v1390, %v1393
  %v1397 = vrot.slane %v1391, 1
  %v1399 = vmax.f32 %v1391, %v1397
  %v1401 = vrot.slane %v1395, 1
  %v1403 = vrot.slane %v1395, 2
  %v1405 = vrot.slane %v1395, 3
  %v1408 = vrot.slane %v1399, 4
  %v1410 = vrot.slane %v1399, 5
  %v1412 = vsel %vm1325, %v1395, %v1401
  %v1413 = vsel %vm1327, %v1412, %v1403
  %v1414 = vsel %vm1329, %v1413, %v1405
  %v1415 = vsel %vm1331, %v1414, %v1408
  %v1416 = vsel %vm1333, %v1415, %v1410
  %s1417 = scalar_lea.vmem %s10, 8
  %1418 = vst.msk [vmem:[%s1417] sm:$0x3f] %vm1335, %v1416
  // Predicated region
  $region38: #{encoder_block_forward.1} parent=0 // pred_check
    _
  $region39: #{encoder_block_forward.1} parent=0 // pred_check_branch
    %1420 = sbr.rel (0) target = $region41
  $region40: #{encoder_block_forward.1} parent=0 // pred_region
    _
  $region41: #{encoder_block_forward.1} parent=0 // pred_fallthru
    _
  // Predicated region
  $region42: #{encoder_block_forward.1} parent=0 // pred_check
    _
  $region43: #{encoder_block_forward.1} parent=0 // pred_check_branch
    %1422 = sbr.rel (0) target = $region45
  $region44: #{encoder_block_forward.1} parent=0 // pred_region
    _
  $region45: #{encoder_block_forward.1} parent=0 // pred_fallthru
    _
  // Predicated region
  $region46: #{encoder_block_forward.1} parent=0 // pred_check
    _
  $region47: #{encoder_block_forward.1} parent=0 // pred_check_branch
    %1424 = sbr.rel (0) target = $region49
  $region48: #{encoder_block_forward.1} parent=0 // pred_region
    _
  $region49: #{encoder_block_forward.1} parent=0 // pred_fallthru
    _
  // Predicated region
  $region50: #{encoder_block_forward.1} parent=0 // pred_check
    _
  $region51: #{encoder_block_forward.1} parent=0 // pred_check_branch
    %1426 = sbr.rel (0) target = $region53
  $region52: #{encoder_block_forward.1} parent=0 // pred_region
    _
  $region53: #{encoder_block_forward.1} parent=0 // pred_fallthru
    _

</llo_original>
